<compile_context>
chip_gen: v7x
topology: tpu7x:2x2x1
jax: 0.10.0
libtpu: 0.0.40
codegen_flags: <defaults>
</compile_context>

<pallas_src>
import jax
import jax.numpy as jnp
from jax.experimental import pallas as pl
from jax.experimental.pallas import tpu as pltpu

LANE = 128              # TPU lane width: pad every feature dim to this
FRAMES_PER_BLOCK = 32   # frames (graphs) stacked per grid step -> M = 32*8 = 256 rows


def _graph_gcn_kernel(a_ref, x_ref, w_ref, b_ref, out_ref):
    """Fused forward for one block of frames.

    a_ref  : [M, M]          bf16 block-diagonal normalized adjacency (M = GB * N)
    x_ref  : [M, LANE]       bf16 node features (zero-padded on the lane axis)
    w_ref  : [4, LANE, LANE] bf16 packed weights (w1, w2, w3, wfc), zero-padded
    b_ref  : [8, LANE]       f32 packed biases  (b1, b2, b3, bfc, 4 zero rows)
    out_ref: [M, LANE]       f32 (real out_c columns sliced outside the kernel)
    """
    a = a_ref[...]

    def gcn_relu(h_bf16, layer):
        # GCNConv: A_hat @ (H @ W) + b, then ReLU.
        # Matmuls run in bf16 on the MXU with f32 accumulation; bias/ReLU in f32.
        hw = jnp.dot(h_bf16, w_ref[layer], preferred_element_type=jnp.float32)
        agg = jnp.dot(a, hw.astype(jnp.bfloat16), preferred_element_type=jnp.float32)
        return jnp.maximum(agg + b_ref[layer:layer + 1, :], 0.0)

    h = gcn_relu(x_ref[...], 0).astype(jnp.bfloat16)
    # TODO(synk): dropout(p=0.5) is identity in eval mode; training-mode RNG mask not implemented.
    h = gcn_relu(h, 1).astype(jnp.bfloat16)
    h = gcn_relu(h, 2).astype(jnp.bfloat16)
    out_ref[...] = (jnp.dot(h, w_ref[3], preferred_element_type=jnp.float32)
                    + b_ref[3:4, :])


def gcn_normalized_adjacency(edge_index, num_nodes):
    """Dense equivalent of PyG gcn_norm with add_self_loops=True (glue, plain JAX)."""
    src = edge_index[0]  # message source j
    dst = edge_index[1]  # message target i
    a = jnp.zeros((num_nodes, num_nodes), jnp.float32).at[dst, src].add(1.0)
    a = a + jnp.eye(num_nodes, dtype=jnp.float32)          # self loops
    deg = a.sum(axis=1)
    dinv = jnp.where(deg > 0, jax.lax.rsqrt(deg), 0.0)
    return dinv[:, None] * a * dinv[None, :]


def _pad2d(a, rows, cols):
    out = jnp.zeros((rows, cols), a.dtype)
    return out.at[:a.shape[0], :a.shape[1]].set(a)


def graph_gcn_forward(params, x, edge_index, frames_per_block=FRAMES_PER_BLOCK):
    """Batched forward: x is [B, N, in_c]; edge_index (the skeleton) is shared by all frames."""
    b, n, in_c = x.shape
    out_c = params["wfc"].shape[1]

    # Frames per grid step: shrink for tiny batches, keep GB*N a multiple of 8 sublanes.
    gb = max(1, min(frames_per_block, b))
    while (gb * n) % 8 != 0:
        gb += 1

    # Pad the batch to a multiple of the per-step frame block.
    b_pad = pl.cdiv(b, gb) * gb
    x = jnp.pad(x, ((0, b_pad - b), (0, 0), (0, 0)))

    # Lane-dense bf16 node features: [B_pad * N, LANE].
    x_p = jnp.pad(x, ((0, 0), (0, 0), (0, LANE - in_c)))
    x_p = x_p.reshape(b_pad * n, LANE).astype(jnp.bfloat16)

    # Shared skeleton -> block-diagonal adjacency for one grid step of GB frames,
    # so aggregation is a single [M, M] @ [M, LANE] MXU matmul.
    a_hat = gcn_normalized_adjacency(edge_index, n)
    a_blk = jnp.kron(jnp.eye(gb, dtype=jnp.float32), a_hat).astype(jnp.bfloat16)

    # Packed, zero-padded bf16 weights / f32 biases (padded lanes stay exactly zero
    # through bias-add + ReLU, so they never pollute the real lanes).
    w_all = jnp.stack([_pad2d(params["w1"], LANE, LANE),
                       _pad2d(params["w2"], LANE, LANE),
                       _pad2d(params["w3"], LANE, LANE),
                       _pad2d(params["wfc"], LANE, LANE)]).astype(jnp.bfloat16)
    b_all = jnp.concatenate([_pad2d(params["b1"], 1, LANE),
                             _pad2d(params["b2"], 1, LANE),
                             _pad2d(params["b3"], 1, LANE),
                             _pad2d(params["bfc"], 1, LANE),
                             jnp.zeros((4, LANE), jnp.float32)], axis=0)   # [8, LANE]

    m = gb * n                       # rows per grid step
    grid = (b_pad // gb,)

    shared2 = lambda i: (0, 0)       # constants: same block every step (stay resident)
    shared3 = lambda i: (0, 0, 0)
    rows = lambda i: (i, 0)          # activations / output: walk the frame blocks

    out_pad = pl.pallas_call(
        _graph_gcn_kernel,
        out_shape=jax.ShapeDtypeStruct((b_pad * n, LANE), jnp.float32),
        grid=grid,
        in_specs=[
            pl.BlockSpec((m, m), shared2),             # block-diag A_hat
            pl.BlockSpec((m, LANE), rows),             # x
            pl.BlockSpec((4, LANE, LANE), shared3),    # packed weights
            pl.BlockSpec((8, LANE), shared2),          # packed biases
        ],
        out_specs=pl.BlockSpec((m, LANE), rows),
        compiler_params=pltpu.CompilerParams(
            dimension_semantics=("parallel",)),        # batch axis -> both TCs on v7x
    )(a_blk, x_p, w_all, b_all)

    return out_pad.reshape(b_pad, n, LANE)[:b, :, :out_c]


def init_params(key, in_channels, hidden_channels, out_channels):
    """Deterministic synthetic params (shapes match GCNConv / Linear of the module)."""
    ks = jax.random.split(key, 8)

    def lin_w(k, fin, fout):
        scale = 1.0 / jnp.sqrt(jnp.float32(fin))
        return jax.random.uniform(k, (fin, fout), jnp.float32, -scale, scale)

    def lin_b(k, fin, fout):
        scale = 1.0 / jnp.sqrt(jnp.float32(fin))
        return jax.random.uniform(k, (1, fout), jnp.float32, -scale, scale)

    return {
        "w1": lin_w(ks[0], in_channels, hidden_channels),
        "b1": lin_b(ks[1], in_channels, hidden_channels),
        "w2": lin_w(ks[2], hidden_channels, hidden_channels),
        "b2": lin_b(ks[3], hidden_channels, hidden_channels),
        "w3": lin_w(ks[4], hidden_channels, hidden_channels),
        "b3": lin_b(ks[5], hidden_channels, hidden_channels),
        "wfc": lin_w(ks[6], hidden_channels, out_channels),
        "bfc": lin_b(ks[7], hidden_channels, out_channels),
    }


def reference_forward(params, x, edge_index):
    """Per-frame plain-JAX f32 reference (eval-mode dropout == identity)."""
    a_hat = gcn_normalized_adjacency(edge_index, x.shape[1])

    def one_frame(xf):
        h = jnp.maximum(a_hat @ (xf @ params["w1"]) + params["b1"], 0.0)
        h = jnp.maximum(a_hat @ (h @ params["w2"]) + params["b2"], 0.0)
        h = jnp.maximum(a_hat @ (h @ params["w3"]) + params["b3"], 0.0)
        return h @ params["wfc"] + params["bfc"]

    return jax.vmap(one_frame)(x)


if __name__ == "__main__":
    key = jax.random.PRNGKey(0)
    B = 64                    # video frames (each a graph with the same skeleton)
    N = 8                     # keypoints per frame
    in_c, hid_c, out_c = 4, 32, 4

    k_x, k_p = jax.random.split(key)
    x = jax.random.normal(k_x, (B, N, in_c), jnp.float32)

    # bidirectional ring skeleton: edge_index is [2, E] (src row 0, dst row 1)
    idx = jnp.arange(N, dtype=jnp.int32)
    nxt = (idx + 1) % N
    edge_index = jnp.stack([jnp.concatenate([idx, nxt]),
                            jnp.concatenate([nxt, idx])]).astype(jnp.int32)

    params = init_params(k_p, in_c, hid_c, out_c)

    out = graph_gcn_forward(params, x, edge_index)
    out = jax.block_until_ready(out)

    ref = reference_forward(params, x, edge_index)
    assert out.shape == (B, N, out_c)
    # bf16 MXU operands -> loose-but-safe tolerance vs. the pure-f32 reference
    assert jnp.allclose(out, ref, atol=5e-2, rtol=5e-2)

    print("KERNEL_OK")
</pallas_src>

<mosaic_0001>
module attributes {stable_mosaic.version = 11 : i64} {
  func.func @_graph_gcn_kernel(%arg0: i32, %arg1: memref<256x256xbf16, #tpu.memory_space<vmem>>, %arg2: memref<256x128xbf16, #tpu.memory_space<vmem>>, %arg3: memref<4x128x128xbf16, #tpu.memory_space<vmem>>, %arg4: memref<8x128xf32, #tpu.memory_space<vmem>>, %arg5: memref<256x128xf32, #tpu.memory_space<vmem>>) attributes {dimension_semantics = [#tpu.dimension_semantics<parallel>], iteration_bounds = array<i64: 2>, scalar_prefetch = 0 : i64, scratch_operands = 0 : i64, tpu.core_type = #tpu.core_type<tc>, window_params = [{pipeline_mode = #tpu.pipeline_mode<synchronous>, transform_indices = @transform_0, window_bounds = array<i64: 256, 256>}, {transform_indices = @transform_1, window_bounds = array<i64: 256, 128>}, {pipeline_mode = #tpu.pipeline_mode<synchronous>, transform_indices = @transform_2, window_bounds = array<i64: 4, 128, 128>}, {pipeline_mode = #tpu.pipeline_mode<synchronous>, transform_indices = @transform_3, window_bounds = array<i64: 8, 128>}, {transform_indices = @transform_4, window_bounds = array<i64: 256, 128>}]} {
    %c0 = arith.constant 0 : index
    %c0_0 = arith.constant 0 : index
    %0 = vector.load %arg1[%c0, %c0_0] : memref<256x256xbf16, #tpu.memory_space<vmem>>, vector<256x256xbf16>
    %c0_1 = arith.constant 0 : index
    %c0_2 = arith.constant 0 : index
    %1 = vector.load %arg2[%c0_1, %c0_2] : memref<256x128xbf16, #tpu.memory_space<vmem>>, vector<256x128xbf16>
    %c0_3 = arith.constant 0 : index
    %c0_4 = arith.constant 0 : index
    %c0_5 = arith.constant 0 : index
    %2 = vector.load %arg3[%c0_3, %c0_4, %c0_5] : memref<4x128x128xbf16, #tpu.memory_space<vmem>>, vector<1x128x128xbf16>
    %3 = vector.shape_cast %2 : vector<1x128x128xbf16> to vector<128x128xbf16>
    %cst = arith.constant dense<0.000000e+00> : vector<256x128xf32>
    %4 = tpu.matmul %1, %3, %cst {dimension_numbers = #tpu.dot_dimension_numbers<[1], [0], [0], [1], [0, 0, 1, 1], [], []>} : vector<256x128xbf16>, vector<128x128xbf16>, vector<256x128xf32> -> vector<256x128xf32>
    %5 = arith.truncf %4 : vector<256x128xf32> to vector<256x128xbf16>
    %cst_6 = arith.constant dense<0.000000e+00> : vector<256x128xf32>
    %6 = tpu.matmul %0, %5, %cst_6 {dimension_numbers = #tpu.dot_dimension_numbers<[1], [0], [0], [1], [0, 0, 1, 1], [], []>} : vector<256x256xbf16>, vector<256x128xbf16>, vector<256x128xf32> -> vector<256x128xf32>
    %c0_7 = arith.constant 0 : index
    %c0_8 = arith.constant 0 : index
    %7 = vector.load %arg4[%c0_7, %c0_8] : memref<8x128xf32, #tpu.memory_space<vmem>>, vector<1x128xf32>
    %8 = vector.broadcast %7 : vector<1x128xf32> to vector<256x128xf32>
    %9 = arith.addf %6, %8 : vector<256x128xf32>
    %cst_9 = arith.constant 0.000000e+00 : f32
    %10 = vector.broadcast %cst_9 : f32 to vector<256x128xf32>
    %11 = arith.maximumf %9, %10 : vector<256x128xf32>
    %12 = arith.truncf %11 : vector<256x128xf32> to vector<256x128xbf16>
    %c1 = arith.constant 1 : index
    %c0_10 = arith.constant 0 : index
    %c0_11 = arith.constant 0 : index
    %13 = vector.load %arg3[%c1, %c0_10, %c0_11] : memref<4x128x128xbf16, #tpu.memory_space<vmem>>, vector<1x128x128xbf16>
    %14 = vector.shape_cast %13 : vector<1x128x128xbf16> to vector<128x128xbf16>
    %cst_12 = arith.constant dense<0.000000e+00> : vector<256x128xf32>
    %15 = tpu.matmul %12, %14, %cst_12 {dimension_numbers = #tpu.dot_dimension_numbers<[1], [0], [0], [1], [0, 0, 1, 1], [], []>} : vector<256x128xbf16>, vector<128x128xbf16>, vector<256x128xf32> -> vector<256x128xf32>
    %16 = arith.truncf %15 : vector<256x128xf32> to vector<256x128xbf16>
    %cst_13 = arith.constant dense<0.000000e+00> : vector<256x128xf32>
    %17 = tpu.matmul %0, %16, %cst_13 {dimension_numbers = #tpu.dot_dimension_numbers<[1], [0], [0], [1], [0, 0, 1, 1], [], []>} : vector<256x256xbf16>, vector<256x128xbf16>, vector<256x128xf32> -> vector<256x128xf32>
    %c1_14 = arith.constant 1 : index
    %c0_15 = arith.constant 0 : index
    %18 = vector.load %arg4[%c1_14, %c0_15] : memref<8x128xf32, #tpu.memory_space<vmem>>, vector<1x128xf32>
    %19 = vector.broadcast %18 : vector<1x128xf32> to vector<256x128xf32>
    %20 = arith.addf %17, %19 : vector<256x128xf32>
    %cst_16 = arith.constant 0.000000e+00 : f32
    %21 = vector.broadcast %cst_16 : f32 to vector<256x128xf32>
    %22 = arith.maximumf %20, %21 : vector<256x128xf32>
    %23 = arith.truncf %22 : vector<256x128xf32> to vector<256x128xbf16>
    %c2 = arith.constant 2 : index
    %c0_17 = arith.constant 0 : index
    %c0_18 = arith.constant 0 : index
    %24 = vector.load %arg3[%c2, %c0_17, %c0_18] : memref<4x128x128xbf16, #tpu.memory_space<vmem>>, vector<1x128x128xbf16>
    %25 = vector.shape_cast %24 : vector<1x128x128xbf16> to vector<128x128xbf16>
    %cst_19 = arith.constant dense<0.000000e+00> : vector<256x128xf32>
    %26 = tpu.matmul %23, %25, %cst_19 {dimension_numbers = #tpu.dot_dimension_numbers<[1], [0], [0], [1], [0, 0, 1, 1], [], []>} : vector<256x128xbf16>, vector<128x128xbf16>, vector<256x128xf32> -> vector<256x128xf32>
    %27 = arith.truncf %26 : vector<256x128xf32> to vector<256x128xbf16>
    %cst_20 = arith.constant dense<0.000000e+00> : vector<256x128xf32>
    %28 = tpu.matmul %0, %27, %cst_20 {dimension_numbers = #tpu.dot_dimension_numbers<[1], [0], [0], [1], [0, 0, 1, 1], [], []>} : vector<256x256xbf16>, vector<256x128xbf16>, vector<256x128xf32> -> vector<256x128xf32>
    %c2_21 = arith.constant 2 : index
    %c0_22 = arith.constant 0 : index
    %29 = vector.load %arg4[%c2_21, %c0_22] : memref<8x128xf32, #tpu.memory_space<vmem>>, vector<1x128xf32>
    %30 = vector.broadcast %29 : vector<1x128xf32> to vector<256x128xf32>
    %31 = arith.addf %28, %30 : vector<256x128xf32>
    %cst_23 = arith.constant 0.000000e+00 : f32
    %32 = vector.broadcast %cst_23 : f32 to vector<256x128xf32>
    %33 = arith.maximumf %31, %32 : vector<256x128xf32>
    %34 = arith.truncf %33 : vector<256x128xf32> to vector<256x128xbf16>
    %c3 = arith.constant 3 : index
    %c0_24 = arith.constant 0 : index
    %c0_25 = arith.constant 0 : index
    %35 = vector.load %arg3[%c3, %c0_24, %c0_25] : memref<4x128x128xbf16, #tpu.memory_space<vmem>>, vector<1x128x128xbf16>
    %36 = vector.shape_cast %35 : vector<1x128x128xbf16> to vector<128x128xbf16>
    %cst_26 = arith.constant dense<0.000000e+00> : vector<256x128xf32>
    %37 = tpu.matmul %34, %36, %cst_26 {dimension_numbers = #tpu.dot_dimension_numbers<[1], [0], [0], [1], [0, 0, 1, 1], [], []>} : vector<256x128xbf16>, vector<128x128xbf16>, vector<256x128xf32> -> vector<256x128xf32>
    %c3_27 = arith.constant 3 : index
    %c0_28 = arith.constant 0 : index
    %38 = vector.load %arg4[%c3_27, %c0_28] : memref<8x128xf32, #tpu.memory_space<vmem>>, vector<1x128xf32>
    %39 = vector.broadcast %38 : vector<1x128xf32> to vector<256x128xf32>
    %40 = arith.addf %37, %39 : vector<256x128xf32>
    %c0_29 = arith.constant 0 : index
    %c0_30 = arith.constant 0 : index
    %41 = vector.load %arg5[%c0_29, %c0_30] : memref<256x128xf32, #tpu.memory_space<vmem>>, vector<256x128xf32>
    tpu.vector_store %arg5[%c0_29, %c0_30], %40 {strides = array<i32>} : memref<256x128xf32, #tpu.memory_space<vmem>>, vector<256x128xf32>,
    return
  }
  func.func @transform_0(%arg0: i32) -> (i32, i32) {
    %c0_i32 = arith.constant 0 : i32
    %c0_i32_0 = arith.constant 0 : i32
    %c0_i32_1 = arith.constant 0 : i32
    return %c0_i32, %c0_i32_0 : i32, i32
  }
  func.func @transform_1(%arg0: i32) -> (i32, i32) {
    %c0_i32 = arith.constant 0 : i32
    %c0_i32_0 = arith.constant 0 : i32
    return %arg0, %c0_i32 : i32, i32
  }
  func.func @transform_2(%arg0: i32) -> (i32, i32, i32) {
    %c0_i32 = arith.constant 0 : i32
    %c0_i32_0 = arith.constant 0 : i32
    %c0_i32_1 = arith.constant 0 : i32
    %c0_i32_2 = arith.constant 0 : i32
    return %c0_i32, %c0_i32_0, %c0_i32_1 : i32, i32, i32
  }
  func.func @transform_3(%arg0: i32) -> (i32, i32) {
    %c0_i32 = arith.constant 0 : i32
    %c0_i32_0 = arith.constant 0 : i32
    %c0_i32_1 = arith.constant 0 : i32
    return %c0_i32, %c0_i32_0 : i32, i32
  }
  func.func @transform_4(%arg0: i32) -> (i32, i32) {
    %c0_i32 = arith.constant 0 : i32
    %c0_i32_0 = arith.constant 0 : i32
    return %arg0, %c0_i32 : i32, i32
  }
}

</mosaic_0001>

<llo_original>
// kernel: tpu_custom_call.1
$region0: #{tpu_custom_call.1}
  #allocation0 [shape = 'u32[]', space=smem, size = 0x4, offset = 0x4, fixed_abs, tag = 'smem constant byte address 0x4 - core index']
  #allocation1 [shape = 'u32[144,128]{1,0:T(1,128)}', space=vmem, size = 0x12000, scoped, tag = 'internal scratch']
  %s0 = inlined_call_operand.hbm [shape: bf16[256,256], index: 0, kind: input, shape index: {}]
  %s1 = inlined_call_operand.hbm [shape: bf16[512,128], index: 1, kind: input, shape index: {}]
  %s2 = inlined_call_operand.hbm [shape: bf16[4,128,128], index: 2, kind: input, shape index: {}]
  %s3 = inlined_call_operand.vmem [shape: f32[8,128], index: 3, kind: input, shape index: {}]
  %s4 = inlined_call_operand.hbm [shape: f32[512,128], index: 4, kind: output, shape index: {}]
  %s5 = sld [smem:[#allocation0]]
  $region61: #{tpu_custom_call.1} parent=0
    _
  %s7 = ssub.s32 1, %s5
  %s8 = scalar_select 0, %s7, %s5
  $region1: #{tpu_custom_call.1} parent=0
    #allocation2 [shape = 'u8[131072]{0}', space=vmem, size = 0x20000, scoped, tag = 'input window, operand 0, single buffered']
    #allocation3 [shape = 's32[2]{0}', space=sflag, size = 0x8, scoped, tag = 'scoped memory for tpu_custom_call.1']
    #allocation4 [shape = 's32[2]{0}', space=sflag, size = 0x8, scoped, tag = 'scoped memory for tpu_custom_call.1']
    #allocation5 [shape = 'u8[131072]{0}', space=vmem, size = 0x20000, scoped, tag = 'input window, operand 1']
    #allocation6 [shape = 's32[2]{0}', space=sflag, size = 0x8, scoped, tag = 'scoped memory for tpu_custom_call.1']
    #allocation7 [shape = 'u8[131072]{0}', space=vmem, size = 0x20000, scoped, tag = 'input window, operand 2, single buffered']
    #allocation8 [shape = 'u8[262144]{0}', space=vmem, size = 0x40000, scoped, tag = 'output window, operand 0']
    %9 = vsyncpa [#allocation3], 0
    %10 = vsyncpa [#allocation6], 0
    %s11 = scalar_lea.sflag [#allocation6], 1
    %12 = vsyncpa %s11, 0
    %13 = vsyncpa [#allocation4], 0
    %s14 = scalar_lea.sflag [#allocation4], 1
    %15 = vsyncpa %s14, 0
    loop: start=0, step=1, limit=4
    $region2: #{tpu_custom_call.1} parent=1 // loop_pre_header
      _
    $region3: #{tpu_custom_call.1} parent=1 // loop_header
      %s17 = sphi 0, %s21
      %p18 = scmp.ge.s32.totalorder %s17, 4
      %s25 = sphi 0, %s25
      %s27 = sphi 0, %s25
      %s28 = sphi 0, %s27
      %s42 = sphi 0, %s28
      %s48 = sphi 0, %s50
      %s51 = sphi 0, %s48
      %s52 = sphi 0, %s51
      %s68 = sphi 0, %s52
      %s72 = sphi 0, %s72
      %s74 = sphi 0, %s72
      %s75 = sphi 0, %s74
      %s89 = sphi 0, %s75
      %s93 = sphi 0, %s93
      %s95 = sphi 0, %s93
      %s96 = sphi 0, %s95
      %s110 = sphi 0, %s96
      %s116 = sphi 0, %s118
      %s119 = sphi 0, %s116
      %s120 = sphi 0, %s119
      %s136 = sphi 0, %s120
    $region4: #{tpu_custom_call.1} parent=1 // loop_header_branch
      %20 = sbr.rel (%p18) target = $region8
    $region5: #{tpu_custom_call.1} parent=1 // loop_body
      %s22 = ssub.s32 %s17, 1
      %s23 = ssub.s32 %s17, 2
      %s24 = sadd.s32 %s17, 1
      %s26 = sadd.s32 %s25, 1
      %p29 = scmp.eq.s32.totalorder %s17, 1
      %p30 = scmp.ne.s32.totalorder %s25, %s27
      %p31 = scmp.eq.s32.totalorder %s17, 0
      %p32 = por %p30, %p31
      %p33 = scmp.ne.s32.totalorder %s25, %s27
      %p34 = scmp.eq.s32.totalorder %s22, 1
      %p35 = por %p33, %p34
      %p36 = scmp.ne.s32.totalorder %s27, %s28
      %p37 = scmp.eq.s32.totalorder %s22, 0
      %p38 = por %p36, %p37
      %p39 = scmp.ne.s32.totalorder %s27, %s28
      %p40 = scmp.eq.s32.totalorder %s23, 1
      %p41 = por %p39, %p40
      %p43 = scmp.ne.s32.totalorder %s28, %s42
      %p44 = scmp.eq.s32.totalorder %s23, 0
      %p45 = por %p43, %p44
      %s46 = ssub.s32 %s17, %s24
      %p47 = scmp.eq.s32.totalorder %s46, 0
      %s49 = sadd.s32 %s48, 1
      %s50 = scalar_select %p47, %s48, %s49
      %p53 = pneg %p47
      %p54 = scmp.eq.s32.totalorder %s17, 1
      %p55 = por %p53, %p54
      %p56 = scmp.ne.s32.totalorder %s48, %s51
      %p57 = scmp.eq.s32.totalorder %s17, 0
      %p58 = por %p56, %p57
      %p59 = scmp.ne.s32.totalorder %s48, %s51
      %p60 = scmp.eq.s32.totalorder %s22, 1
      %p61 = por %p59, %p60
      %p62 = scmp.ne.s32.totalorder %s51, %s52
      %p63 = scmp.eq.s32.totalorder %s22, 0
      %p64 = por %p62, %p63
      %p65 = scmp.ne.s32.totalorder %s51, %s52
      %p66 = scmp.eq.s32.totalorder %s23, 1
      %p67 = por %p65, %p66
      %p69 = scmp.ne.s32.totalorder %s52, %s68
      %p70 = scmp.eq.s32.totalorder %s23, 0
      %p71 = por %p69, %p70
      %s73 = sadd.s32 %s72, 1
      %p76 = scmp.eq.s32.totalorder %s17, 1
      %p77 = scmp.ne.s32.totalorder %s72, %s74
      %p78 = scmp.eq.s32.totalorder %s17, 0
      %p79 = por %p77, %p78
      %p80 = scmp.ne.s32.totalorder %s72, %s74
      %p81 = scmp.eq.s32.totalorder %s22, 1
      %p82 = por %p80, %p81
      %p83 = scmp.ne.s32.totalorder %s74, %s75
      %p84 = scmp.eq.s32.totalorder %s22, 0
      %p85 = por %p83, %p84
      %p86 = scmp.ne.s32.totalorder %s74, %s75
      %p87 = scmp.eq.s32.totalorder %s23, 1
      %p88 = por %p86, %p87
      %p90 = scmp.ne.s32.totalorder %s75, %s89
      %p91 = scmp.eq.s32.totalorder %s23, 0
      %p92 = por %p90, %p91
      %s94 = sadd.s32 %s93, 1
      %p97 = scmp.eq.s32.totalorder %s17, 1
      %p98 = scmp.ne.s32.totalorder %s93, %s95
      %p99 = scmp.eq.s32.totalorder %s17, 0
      %p100 = por %p98, %p99
      %p101 = scmp.ne.s32.totalorder %s93, %s95
      %p102 = scmp.eq.s32.totalorder %s22, 1
      %p103 = por %p101, %p102
      %p104 = scmp.ne.s32.totalorder %s95, %s96
      %p105 = scmp.eq.s32.totalorder %s22, 0
      %p106 = por %p104, %p105
      %p107 = scmp.ne.s32.totalorder %s95, %s96
      %p108 = scmp.eq.s32.totalorder %s23, 1
      %p109 = por %p107, %p108
      %p111 = scmp.ne.s32.totalorder %s96, %s110
      %p112 = scmp.eq.s32.totalorder %s23, 0
      %p113 = por %p111, %p112
      %s114 = ssub.s32 %s17, %s24
      %p115 = scmp.eq.s32.totalorder %s114, 0
      %s117 = sadd.s32 %s116, 1
      %s118 = scalar_select %p115, %s116, %s117
      %p121 = pneg %p115
      %p122 = scmp.eq.s32.totalorder %s17, 1
      %p123 = por %p121, %p122
      %p124 = scmp.ne.s32.totalorder %s116, %s119
      %p125 = scmp.eq.s32.totalorder %s17, 0
      %p126 = por %p124, %p125
      %p127 = scmp.ne.s32.totalorder %s116, %s119
      %p128 = scmp.eq.s32.totalorder %s22, 1
      %p129 = por %p127, %p128
      %p130 = scmp.ne.s32.totalorder %s119, %s120
      %p131 = scmp.eq.s32.totalorder %s22, 0
      %p132 = por %p130, %p131
      %p133 = scmp.ne.s32.totalorder %s119, %s120
      %p134 = scmp.eq.s32.totalorder %s23, 1
      %p135 = por %p133, %p134
      %p137 = scmp.ne.s32.totalorder %s120, %s136
      %p138 = scmp.eq.s32.totalorder %s23, 0
      %p139 = por %p137, %p138
      %p140 = scmp.le.s32.totalorder 1, %s17
      %p141 = scmp.lt.s32.totalorder %s17, 3
      %p142 = pnand %p140, %p141
      %p143 = pneg %p142
      // Predicated region
      $region9: #{tpu_custom_call.1} parent=5 // pred_check
        _
      $region10: #{tpu_custom_call.1} parent=5 // pred_check_branch
        %145 = sbr.rel (%p142) target = $region12
      $region11: #{tpu_custom_call.1} parent=5 // pred_region
        %s146 = ssub.s32 %s17, 1
        // Predicated region
        $region13: #{tpu_custom_call.1} parent=11 // pred_check
          %p147 = pneg %p38
        $region14: #{tpu_custom_call.1} parent=11 // pred_check_branch
          %149 = sbr.rel (%p147) target = $region16
        $region15: #{tpu_custom_call.1} parent=11 // pred_region
          %s151 = ssub.s32 4096, 4096
          %152 = vsyncadd [#allocation3], %s151
          %s153 = sshll.u32 [#allocation2], 4
          %s154 = int_to_ptr.vmem [resolvable:$true] %s153
          %159 = dma.hbm_to_vmem [thread:$0]  %s0, 4096, %s154, [#allocation3], 128, 128, 8
        $region16: #{tpu_custom_call.1} parent=11 // pred_fallthru
          _
        // Predicated region
        $region17: #{tpu_custom_call.1} parent=11 // pred_check
          %p160 = pneg %p85
        $region18: #{tpu_custom_call.1} parent=11 // pred_check_branch
          %162 = sbr.rel (%p160) target = $region20
        $region19: #{tpu_custom_call.1} parent=11 // pred_region
          %s164 = ssub.s32 4096, 4096
          %165 = vsyncadd [#allocation6], %s164
          %s166 = sshll.u32 [#allocation7], 4
          %s167 = int_to_ptr.vmem [resolvable:$true] %s166
          %172 = dma.hbm_to_vmem [thread:$0]  %s2, 4096, %s167, [#allocation6], 64, 64, 4
        $region20: #{tpu_custom_call.1} parent=11 // pred_fallthru
          _
        // Predicated region
        $region21: #{tpu_custom_call.1} parent=11 // pred_check
          %p173 = pneg %p106
        $region22: #{tpu_custom_call.1} parent=11 // pred_check_branch
          %175 = sbr.rel (%p173) target = $region24
        $region23: #{tpu_custom_call.1} parent=11 // pred_region
          _
        $region24: #{tpu_custom_call.1} parent=11 // pred_fallthru
          _
      $region12: #{tpu_custom_call.1} parent=5 // pred_fallthru
        _
      %p176 = scmp.lt.s32.totalorder %s17, 2
      // Predicated region
      $region25: #{tpu_custom_call.1} parent=5 // pred_check
        %p177 = pneg %p176
      $region26: #{tpu_custom_call.1} parent=5 // pred_check_branch
        %179 = sbr.rel (%p177) target = $region28
      $region27: #{tpu_custom_call.1} parent=5 // pred_region
        // Predicated region
        $region29: #{tpu_custom_call.1} parent=27 // pred_check
          %p180 = pneg %p58
        $region30: #{tpu_custom_call.1} parent=27 // pred_check_branch
          %182 = sbr.rel (%p180) target = $region32
        $region31: #{tpu_custom_call.1} parent=27 // pred_region
          %s183 = sand.u32 %s17, 1
          %s184 = scalar_lea.sflag [#allocation6], %s183
          %s185 = sand.u32 %s48, 1
          %s186 = smul.addr %s185, 128
          %s187 = scalar_lea.vmem [#allocation5], %s186
          %s188 = smul.u32 32, %s17
          %s190 = ssub.s32 2048, 2048
          %191 = vsyncadd %s184, %s190
          %s192 = smul.addr %s188, 64
          %s193 = scalar_lea.hbm %s1, %s192
          %s194 = sshll.u32 %s187, 4
          %s195 = int_to_ptr.vmem [resolvable:$true] %s194
          %200 = dma.hbm_to_vmem [thread:$0]  %s193, 2048, %s195, %s184, 64, 64, 4
        $region32: #{tpu_custom_call.1} parent=27 // pred_fallthru
          _
      $region28: #{tpu_custom_call.1} parent=5 // pred_fallthru
        _
      %p201 = scmp.le.s32.totalorder 1, %s17
      %p202 = scmp.lt.s32.totalorder %s17, 3
      %p203 = pnand %p201, %p202
      %p204 = pneg %p203
      // Predicated region
      $region33: #{tpu_custom_call.1} parent=5 // pred_check
        _
      $region34: #{tpu_custom_call.1} parent=5 // pred_check_branch
        %206 = sbr.rel (%p203) target = $region36
      $region35: #{tpu_custom_call.1} parent=5 // pred_region
        %s207 = ssub.s32 %s17, 1
        // Predicated region
        $region37: #{tpu_custom_call.1} parent=35 // pred_check
          %p208 = pneg %p38
        $region38: #{tpu_custom_call.1} parent=35 // pred_check_branch
          %210 = sbr.rel (%p208) target = $region40
        $region39: #{tpu_custom_call.1} parent=35 // pred_region
          %211 = dma.done [#allocation3], 4096
        $region40: #{tpu_custom_call.1} parent=35 // pred_fallthru
          _
        %s212 = sand.u32 %s22, 1
        %s213 = scalar_lea.sflag [#allocation6], %s212
        %s214 = sand.u32 %s51, 1
        %s215 = smul.addr %s214, 128
        %s216 = scalar_lea.vmem [#allocation5], %s215
        // Predicated region
        $region41: #{tpu_custom_call.1} parent=35 // pred_check
          %p217 = pneg %p64
        $region42: #{tpu_custom_call.1} parent=35 // pred_check_branch
          %219 = sbr.rel (%p217) target = $region44
        $region43: #{tpu_custom_call.1} parent=35 // pred_region
          %220 = dma.done %s213, 2048
        $region44: #{tpu_custom_call.1} parent=35 // pred_fallthru
          _
        // Predicated region
        $region45: #{tpu_custom_call.1} parent=35 // pred_check
          %p221 = pneg %p85
        $region46: #{tpu_custom_call.1} parent=35 // pred_check_branch
          %223 = sbr.rel (%p221) target = $region48
        $region47: #{tpu_custom_call.1} parent=35 // pred_region
          %224 = dma.done [#allocation6], 4096
        $region48: #{tpu_custom_call.1} parent=35 // pred_fallthru
          _
        %p225 = pneg %p38
        %p226 = pneg %p35
        %s227 = sand.u32 %s22, 1
        %s228 = scalar_lea.sflag [#allocation6], %s227
        %s229 = sand.u32 %s51, 1
        %s230 = smul.addr %s229, 128
        %s231 = scalar_lea.vmem [#allocation5], %s230
        %p232 = pneg %p64
        %p233 = pneg %p61
        %p234 = pneg %p85
        %p235 = pneg %p82
        %p236 = pneg %p106
        %p237 = pneg %p103
        %p238 = pneg %p132
        %p239 = pneg %p129
        %s240 = sand.u32 %s119, 1
        %s241 = scalar_lea.sflag [#allocation4], %s240
        %s242 = sand.u32 %s119, 1
        %s243 = smul.addr %s242, 256
        %s244 = scalar_lea.vmem [#allocation8], %s243
        %s245 = smul.u32 32, %s22
        %s246 = smul.u32 32, %s22
        %v248 = vld [vmem:[#allocation2] sm:$0xff]
        %v249 = vld [vmem:[#allocation2 + $0x8] sm:$0xff]
        %v250 = vld [vmem:[#allocation2 + $0x10] sm:$0xff]
        %v251 = vld [vmem:[#allocation2 + $0x18] sm:$0xff]
        %v252 = vld [vmem:[#allocation2 + $0x20] sm:$0xff]
        %v253 = vld [vmem:[#allocation2 + $0x28] sm:$0xff]
        %v254 = vld [vmem:[#allocation2 + $0x30] sm:$0xff]
        %v255 = vld [vmem:[#allocation2 + $0x38] sm:$0xff]
        %v256 = vld [vmem:[#allocation2 + $0x40] sm:$0xff]
        %v257 = vld [vmem:[#allocation2 + $0x48] sm:$0xff]
        %v258 = vld [vmem:[#allocation2 + $0x50] sm:$0xff]
        %v259 = vld [vmem:[#allocation2 + $0x58] sm:$0xff]
        %v260 = vld [vmem:[#allocation2 + $0x60] sm:$0xff]
        %v261 = vld [vmem:[#allocation2 + $0x68] sm:$0xff]
        %v262 = vld [vmem:[#allocation2 + $0x70] sm:$0xff]
        %v263 = vld [vmem:[#allocation2 + $0x78] sm:$0xff]
        %v264 = vld [vmem:[#allocation2 + $0x80] sm:$0xff]
        %v265 = vld [vmem:[#allocation2 + $0x88] sm:$0xff]
        %v266 = vld [vmem:[#allocation2 + $0x90] sm:$0xff]
        %v267 = vld [vmem:[#allocation2 + $0x98] sm:$0xff]
        %v268 = vld [vmem:[#allocation2 + $0xa0] sm:$0xff]
        %v269 = vld [vmem:[#allocation2 + $0xa8] sm:$0xff]
        %v270 = vld [vmem:[#allocation2 + $0xb0] sm:$0xff]
        %v271 = vld [vmem:[#allocation2 + $0xb8] sm:$0xff]
        %v272 = vld [vmem:[#allocation2 + $0xc0] sm:$0xff]
        %v273 = vld [vmem:[#allocation2 + $0xc8] sm:$0xff]
        %v274 = vld [vmem:[#allocation2 + $0xd0] sm:$0xff]
        %v275 = vld [vmem:[#allocation2 + $0xd8] sm:$0xff]
        %v276 = vld [vmem:[#allocation2 + $0xe0] sm:$0xff]
        %v277 = vld [vmem:[#allocation2 + $0xe8] sm:$0xff]
        %v278 = vld [vmem:[#allocation2 + $0xf0] sm:$0xff]
        %v279 = vld [vmem:[#allocation2 + $0xf8] sm:$0xff]
        %v280 = vld [vmem:[%s216] sm:$0xf]
        %v281 = vld [vmem:[%s216 + $0x4] sm:$0xf]
        %v282 = vld [vmem:[%s216 + $0x8] sm:$0xf]
        %v283 = vld [vmem:[%s216 + $0xc] sm:$0xf]
        %v284 = vld [vmem:[%s216 + $0x10] sm:$0xf]
        %v285 = vld [vmem:[%s216 + $0x14] sm:$0xf]
        %v286 = vld [vmem:[%s216 + $0x18] sm:$0xf]
        %v287 = vld [vmem:[%s216 + $0x1c] sm:$0xf]
        %v288 = vld [vmem:[%s216 + $0x20] sm:$0xf]
        %v289 = vld [vmem:[%s216 + $0x24] sm:$0xf]
        %v290 = vld [vmem:[%s216 + $0x28] sm:$0xf]
        %v291 = vld [vmem:[%s216 + $0x2c] sm:$0xf]
        %v292 = vld [vmem:[%s216 + $0x30] sm:$0xf]
        %v293 = vld [vmem:[%s216 + $0x34] sm:$0xf]
        %v294 = vld [vmem:[%s216 + $0x38] sm:$0xf]
        %v295 = vld [vmem:[%s216 + $0x3c] sm:$0xf]
        %v296 = vld [vmem:[%s216 + $0x40] sm:$0xf]
        %v297 = vld [vmem:[%s216 + $0x44] sm:$0xf]
        %v298 = vld [vmem:[%s216 + $0x48] sm:$0xf]
        %v299 = vld [vmem:[%s216 + $0x4c] sm:$0xf]
        %v300 = vld [vmem:[%s216 + $0x50] sm:$0xf]
        %v301 = vld [vmem:[%s216 + $0x54] sm:$0xf]
        %v302 = vld [vmem:[%s216 + $0x58] sm:$0xf]
        %v303 = vld [vmem:[%s216 + $0x5c] sm:$0xf]
        %v304 = vld [vmem:[%s216 + $0x60] sm:$0xf]
        %v305 = vld [vmem:[%s216 + $0x64] sm:$0xf]
        %v306 = vld [vmem:[%s216 + $0x68] sm:$0xf]
        %v307 = vld [vmem:[%s216 + $0x6c] sm:$0xf]
        %v308 = vld [vmem:[%s216 + $0x70] sm:$0xf]
        %v309 = vld [vmem:[%s216 + $0x74] sm:$0xf]
        %v310 = vld [vmem:[%s216 + $0x78] sm:$0xf]
        %v311 = vld [vmem:[%s216 + $0x7c] sm:$0xf]
        %v312 = vld [vmem:[#allocation7] sm:$0xf]
        %v313 = vld [vmem:[#allocation7 + $0x4] sm:$0xf]
        %v314 = vld [vmem:[#allocation7 + $0x8] sm:$0xf]
        %v315 = vld [vmem:[#allocation7 + $0xc] sm:$0xf]
        %v316 = vld [vmem:[#allocation7 + $0x10] sm:$0xf]
        %v317 = vld [vmem:[#allocation7 + $0x14] sm:$0xf]
        %v318 = vld [vmem:[#allocation7 + $0x18] sm:$0xf]
        %v319 = vld [vmem:[#allocation7 + $0x1c] sm:$0xf]
        %v320 = vld [vmem:[#allocation7 + $0x20] sm:$0xf]
        %v321 = vld [vmem:[#allocation7 + $0x24] sm:$0xf]
        %v322 = vld [vmem:[#allocation7 + $0x28] sm:$0xf]
        %v323 = vld [vmem:[#allocation7 + $0x2c] sm:$0xf]
        %v324 = vld [vmem:[#allocation7 + $0x30] sm:$0xf]
        %v325 = vld [vmem:[#allocation7 + $0x34] sm:$0xf]
        %v326 = vld [vmem:[#allocation7 + $0x38] sm:$0xf]
        %v327 = vld [vmem:[#allocation7 + $0x3c] sm:$0xf]
        %v360 = vunpack.c.l.b16 %v280
        %v361 = vunpack.c.l.b16 %v281
        %v362 = vunpack.c.l.b16 %v282
        %v363 = vunpack.c.l.b16 %v283
        %v364 = vunpack.c.l.b16 %v284
        %v365 = vunpack.c.l.b16 %v285
        %v366 = vunpack.c.l.b16 %v286
        %v367 = vunpack.c.l.b16 %v287
        %v368 = vunpack.c.l.b16 %v288
        %v369 = vunpack.c.l.b16 %v289
        %v370 = vunpack.c.l.b16 %v290
        %v371 = vunpack.c.l.b16 %v291
        %v372 = vunpack.c.l.b16 %v292
        %v373 = vunpack.c.l.b16 %v293
        %v374 = vunpack.c.l.b16 %v294
        %v375 = vunpack.c.l.b16 %v295
        %v376 = vunpack.c.l.b16 %v296
        %v377 = vunpack.c.l.b16 %v297
        %v378 = vunpack.c.l.b16 %v298
        %v379 = vunpack.c.l.b16 %v299
        %v380 = vunpack.c.l.b16 %v300
        %v381 = vunpack.c.l.b16 %v301
        %v382 = vunpack.c.l.b16 %v302
        %v383 = vunpack.c.l.b16 %v303
        %v384 = vunpack.c.l.b16 %v304
        %v385 = vunpack.c.l.b16 %v305
        %v386 = vunpack.c.l.b16 %v306
        %v387 = vunpack.c.l.b16 %v307
        %v388 = vunpack.c.l.b16 %v308
        %v389 = vunpack.c.l.b16 %v309
        %v390 = vunpack.c.l.b16 %v310
        %v391 = vunpack.c.l.b16 %v311
        %v392 = vpack.c.b16 %v361, %v360
        %v393 = vpack.c.b16 %v363, %v362
        %v394 = vpack.c.b16 %v365, %v364
        %v395 = vpack.c.b16 %v367, %v366
        %v396 = vpack.c.b16 %v369, %v368
        %v397 = vpack.c.b16 %v371, %v370
        %v398 = vpack.c.b16 %v373, %v372
        %v399 = vpack.c.b16 %v375, %v374
        %v400 = vpack.c.b16 %v377, %v376
        %v401 = vpack.c.b16 %v379, %v378
        %v402 = vpack.c.b16 %v381, %v380
        %v403 = vpack.c.b16 %v383, %v382
        %v404 = vpack.c.b16 %v385, %v384
        %v405 = vpack.c.b16 %v387, %v386
        %v406 = vpack.c.b16 %v389, %v388
        %v407 = vpack.c.b16 %v391, %v390
        %v440 = vunpack.c.l.b16 %v312
        %v441 = vunpack.c.l.b16 %v313
        %v442 = vunpack.c.l.b16 %v314
        %v443 = vunpack.c.l.b16 %v315
        %v444 = vunpack.c.l.b16 %v316
        %v445 = vunpack.c.l.b16 %v317
        %v446 = vunpack.c.l.b16 %v318
        %v447 = vunpack.c.l.b16 %v319
        %v448 = vunpack.c.l.b16 %v320
        %v449 = vunpack.c.l.b16 %v321
        %v450 = vunpack.c.l.b16 %v322
        %v451 = vunpack.c.l.b16 %v323
        %v452 = vunpack.c.l.b16 %v324
        %v453 = vunpack.c.l.b16 %v325
        %v454 = vunpack.c.l.b16 %v326
        %v455 = vunpack.c.l.b16 %v327
        %v456 = vpack.c.b16 %v441, %v440
        %v457 = vpack.c.b16 %v443, %v442
        %v458 = vpack.c.b16 %v445, %v444
        %v459 = vpack.c.b16 %v447, %v446
        %v460 = vpack.c.b16 %v449, %v448
        %v461 = vpack.c.b16 %v451, %v450
        %v462 = vpack.c.b16 %v453, %v452
        %v463 = vpack.c.b16 %v455, %v454
        %472 = vmatprep.subr.bf16.mxu0 0
        %473 = vmatpush1.bf16.msra.mxu0 %v456
        %474 = vmatprep.subr.bf16.mxu0 0
        %475 = vmatpush1.bf16.msra.mxu0 %v457
        %476 = vmatprep.subr.bf16.mxu0 0
        %477 = vmatpush1.bf16.msra.mxu0 %v458
        %478 = vmatprep.subr.bf16.mxu0 0
        %479 = vmatpush1.bf16.msra.mxu0 %v459
        %480 = vmatprep.subr.bf16.mxu0 0
        %481 = vmatpush1.bf16.msra.mxu0 %v460
        %482 = vmatprep.subr.bf16.mxu0 0
        %483 = vmatpush1.bf16.msra.mxu0 %v461
        %484 = vmatprep.subr.bf16.mxu0 0
        %485 = vmatpush1.bf16.msra.mxu0 %v462
        %486 = vmatprep.subr.bf16.mxu0 0
        %487 = vmatpush1.bf16.msra.mxu0 %v463
        %488 = vmatprep.subr.bf16.mxu0 0
        %489 = vmatpush1.bf16.msra.mxu0 0
        %490 = vmatprep.subr.bf16.mxu0 0
        %491 = vmatpush1.bf16.msra.mxu0 0
        %492 = vmatprep.subr.bf16.mxu0 0
        %493 = vmatpush1.bf16.msra.mxu0 0
        %494 = vmatprep.subr.bf16.mxu0 0
        %495 = vmatpush1.bf16.msra.mxu0 0
        %496 = vmatprep.subr.bf16.mxu0 0
        %497 = vmatpush1.bf16.msra.mxu0 0
        %498 = vmatprep.subr.bf16.mxu0 0
        %499 = vmatpush1.bf16.msra.mxu0 0
        %500 = vmatprep.subr.bf16.mxu0 0
        %501 = vmatpush1.bf16.msra.mxu0 0
        %502 = vmatprep.subr.bf16.mxu0 0
        %503 = vmatpush1.bf16.msra.mxu0 0
        %504 = vmatprep.mubr.bf16.mxu0 0
        %505 = vmatmul.mubr.bf16.gmra.mrb[0].mxu0 %v392
        %v506 = vpop.f32.mrb[0].mxu0
        %v507 = vadd.f32 0.0, %v506
        %v508 = vpop.f32.mrb[0].mxu0
        %v509 = vpop.f32.mrb[0].mxu0
        %v510 = vadd.f32 0.0, %v509
        %v511 = vpop.f32.mrb[0].mxu0
        %512 = vmatprep.mubr.bf16.mxu0 0
        %513 = vmatmul.mubr.bf16.gmra.mrb[0].mxu0 %v393
        %v514 = vpop.f32.mrb[0].mxu0
        %v515 = vadd.f32 0.0, %v514
        %v516 = vpop.f32.mrb[0].mxu0
        %v517 = vpop.f32.mrb[0].mxu0
        %v518 = vadd.f32 0.0, %v517
        %v519 = vpop.f32.mrb[0].mxu0
        %520 = vmatprep.mubr.bf16.mxu0 0
        %521 = vmatmul.mubr.bf16.gmra.mrb[0].mxu0 %v394
        %v522 = vpop.f32.mrb[0].mxu0
        %v523 = vadd.f32 0.0, %v522
        %v524 = vpop.f32.mrb[0].mxu0
        %v525 = vpop.f32.mrb[0].mxu0
        %v526 = vadd.f32 0.0, %v525
        %v527 = vpop.f32.mrb[0].mxu0
        %528 = vmatprep.mubr.bf16.mxu0 0
        %529 = vmatmul.mubr.bf16.gmra.mrb[0].mxu0 %v395
        %v530 = vpop.f32.mrb[0].mxu0
        %v531 = vadd.f32 0.0, %v530
        %v532 = vpop.f32.mrb[0].mxu0
        %v533 = vpop.f32.mrb[0].mxu0
        %v534 = vadd.f32 0.0, %v533
        %v535 = vpop.f32.mrb[0].mxu0
        %536 = vmatprep.mubr.bf16.mxu0 0
        %537 = vmatmul.mubr.bf16.gmra.mrb[0].mxu0 %v396
        %v538 = vpop.f32.mrb[0].mxu0
        %v539 = vadd.f32 0.0, %v538
        %v540 = vpop.f32.mrb[0].mxu0
        %v541 = vpop.f32.mrb[0].mxu0
        %v542 = vadd.f32 0.0, %v541
        %v543 = vpop.f32.mrb[0].mxu0
        %544 = vmatprep.mubr.bf16.mxu0 0
        %545 = vmatmul.mubr.bf16.gmra.mrb[0].mxu0 %v397
        %v546 = vpop.f32.mrb[0].mxu0
        %v547 = vadd.f32 0.0, %v546
        %v548 = vpop.f32.mrb[0].mxu0
        %v549 = vpop.f32.mrb[0].mxu0
        %v550 = vadd.f32 0.0, %v549
        %v551 = vpop.f32.mrb[0].mxu0
        %552 = vmatprep.mubr.bf16.mxu0 0
        %553 = vmatmul.mubr.bf16.gmra.mrb[0].mxu0 %v398
        %v554 = vpop.f32.mrb[0].mxu0
        %v555 = vadd.f32 0.0, %v554
        %v556 = vpop.f32.mrb[0].mxu0
        %v557 = vpop.f32.mrb[0].mxu0
        %v558 = vadd.f32 0.0, %v557
        %v559 = vpop.f32.mrb[0].mxu0
        %560 = vmatprep.mubr.bf16.mxu0 0
        %561 = vmatmul.mubr.bf16.gmra.mrb[0].mxu0 %v399
        %v562 = vpop.f32.mrb[0].mxu0
        %v563 = vadd.f32 0.0, %v562
        %v564 = vpop.f32.mrb[0].mxu0
        %v565 = vpop.f32.mrb[0].mxu0
        %v566 = vadd.f32 0.0, %v565
        %v567 = vpop.f32.mrb[0].mxu0
        %568 = vmatprep.mubr.bf16.mxu0 0
        %569 = vmatmul.mubr.bf16.gmra.mrb[0].mxu0 %v400
        %v570 = vpop.f32.mrb[0].mxu0
        %v571 = vadd.f32 0.0, %v570
        %v572 = vpop.f32.mrb[0].mxu0
        %v573 = vpop.f32.mrb[0].mxu0
        %v574 = vadd.f32 0.0, %v573
        %v575 = vpop.f32.mrb[0].mxu0
        %576 = vmatprep.mubr.bf16.mxu0 0
        %577 = vmatmul.mubr.bf16.gmra.mrb[0].mxu0 %v401
        %v578 = vpop.f32.mrb[0].mxu0
        %v579 = vadd.f32 0.0, %v578
        %v580 = vpop.f32.mrb[0].mxu0
        %v581 = vpop.f32.mrb[0].mxu0
        %v582 = vadd.f32 0.0, %v581
        %v583 = vpop.f32.mrb[0].mxu0
        %584 = vmatprep.mubr.bf16.mxu0 0
        %585 = vmatmul.mubr.bf16.gmra.mrb[0].mxu0 %v402
        %v586 = vpop.f32.mrb[0].mxu0
        %v587 = vadd.f32 0.0, %v586
        %v588 = vpop.f32.mrb[0].mxu0
        %v589 = vpop.f32.mrb[0].mxu0
        %v590 = vadd.f32 0.0, %v589
        %v591 = vpop.f32.mrb[0].mxu0
        %592 = vmatprep.mubr.bf16.mxu0 0
        %593 = vmatmul.mubr.bf16.gmra.mrb[0].mxu0 %v403
        %v594 = vpop.f32.mrb[0].mxu0
        %v595 = vadd.f32 0.0, %v594
        %v596 = vpop.f32.mrb[0].mxu0
        %v597 = vpop.f32.mrb[0].mxu0
        %v598 = vadd.f32 0.0, %v597
        %v599 = vpop.f32.mrb[0].mxu0
        %600 = vmatprep.mubr.bf16.mxu0 0
        %601 = vmatmul.mubr.bf16.gmra.mrb[0].mxu0 %v404
        %v602 = vpop.f32.mrb[0].mxu0
        %v603 = vadd.f32 0.0, %v602
        %v604 = vpop.f32.mrb[0].mxu0
        %v605 = vpop.f32.mrb[0].mxu0
        %v606 = vadd.f32 0.0, %v605
        %v607 = vpop.f32.mrb[0].mxu0
        %608 = vmatprep.mubr.bf16.mxu0 0
        %609 = vmatmul.mubr.bf16.gmra.mrb[0].mxu0 %v405
        %v610 = vpop.f32.mrb[0].mxu0
        %v611 = vadd.f32 0.0, %v610
        %v612 = vpop.f32.mrb[0].mxu0
        %v613 = vpop.f32.mrb[0].mxu0
        %v614 = vadd.f32 0.0, %v613
        %v615 = vpop.f32.mrb[0].mxu0
        %616 = vmatprep.mubr.bf16.mxu0 0
        %617 = vmatmul.mubr.bf16.gmra.mrb[0].mxu0 %v406
        %v618 = vpop.f32.mrb[0].mxu0
        %v619 = vadd.f32 0.0, %v618
        %v620 = vpop.f32.mrb[0].mxu0
        %v621 = vpop.f32.mrb[0].mxu0
        %v622 = vadd.f32 0.0, %v621
        %v623 = vpop.f32.mrb[0].mxu0
        %624 = vmatprep.mubr.bf16.mxu0 0
        %625 = vmatmul.mubr.bf16.gmra.mrb[0].mxu0 %v407
        %v626 = vpop.f32.mrb[0].mxu0
        %v627 = vadd.f32 0.0, %v626
        %v628 = vpop.f32.mrb[0].mxu0
        %v629 = vpop.f32.mrb[0].mxu0
        %v630 = vadd.f32 0.0, %v629
        %v631 = vpop.f32.mrb[0].mxu0
        %632 = vdwg.mxu0
        %v633 = vpack.c.bf16 %v510, %v507
        %v634 = vpack.c.bf16 %v518, %v515
        %v635 = vpack.c.bf16 %v526, %v523
        %v636 = vpack.c.bf16 %v534, %v531
        %v637 = vpack.c.bf16 %v542, %v539
        %v638 = vpack.c.bf16 %v550, %v547
        %v639 = vpack.c.bf16 %v558, %v555
        %v640 = vpack.c.bf16 %v566, %v563
        %v641 = vpack.c.bf16 %v574, %v571
        %v642 = vpack.c.bf16 %v582, %v579
        %v643 = vpack.c.bf16 %v590, %v587
        %v644 = vpack.c.bf16 %v598, %v595
        %v645 = vpack.c.bf16 %v606, %v603
        %v646 = vpack.c.bf16 %v614, %v611
        %v647 = vpack.c.bf16 %v622, %v619
        %v648 = vpack.c.bf16 %v630, %v627
        %v649 = vld [vmem:[%s3] sm:$0x1]
        %v650 = vlaneseq
        %v651 = vshrl.u32 %v650, 7
        %v652 = vsub.s32 0, %v651
        %v653 = vrot.slane %v649, %v652
        %v686 = vunpack.c.l.b16 %v248
        %v687 = vunpack.c.h.b16 %v248
        %v688 = vunpack.c.l.b16 %v249
        %v689 = vunpack.c.h.b16 %v249
        %v690 = vunpack.c.l.b16 %v250
        %v691 = vunpack.c.h.b16 %v250
        %v692 = vunpack.c.l.b16 %v251
        %v693 = vunpack.c.h.b16 %v251
        %v694 = vunpack.c.l.b16 %v252
        %v695 = vunpack.c.h.b16 %v252
        %v696 = vunpack.c.l.b16 %v253
        %v697 = vunpack.c.h.b16 %v253
        %v698 = vunpack.c.l.b16 %v254
        %v699 = vunpack.c.h.b16 %v254
        %v700 = vunpack.c.l.b16 %v255
        %v701 = vunpack.c.h.b16 %v255
        %v702 = vunpack.c.l.b16 %v256
        %v703 = vunpack.c.h.b16 %v256
        %v704 = vunpack.c.l.b16 %v257
        %v705 = vunpack.c.h.b16 %v257
        %v706 = vunpack.c.l.b16 %v258
        %v707 = vunpack.c.h.b16 %v258
        %v708 = vunpack.c.l.b16 %v259
        %v709 = vunpack.c.h.b16 %v259
        %v710 = vunpack.c.l.b16 %v260
        %v711 = vunpack.c.h.b16 %v260
        %v712 = vunpack.c.l.b16 %v261
        %v713 = vunpack.c.h.b16 %v261
        %v714 = vunpack.c.l.b16 %v262
        %v715 = vunpack.c.h.b16 %v262
        %v716 = vunpack.c.l.b16 %v263
        %v717 = vunpack.c.h.b16 %v263
        %v718 = vunpack.c.l.b16 %v264
        %v719 = vunpack.c.h.b16 %v264
        %v720 = vunpack.c.l.b16 %v265
        %v721 = vunpack.c.h.b16 %v265
        %v722 = vunpack.c.l.b16 %v266
        %v723 = vunpack.c.h.b16 %v266
        %v724 = vunpack.c.l.b16 %v267
        %v725 = vunpack.c.h.b16 %v267
        %v726 = vunpack.c.l.b16 %v268
        %v727 = vunpack.c.h.b16 %v268
        %v728 = vunpack.c.l.b16 %v269
        %v729 = vunpack.c.h.b16 %v269
        %v730 = vunpack.c.l.b16 %v270
        %v731 = vunpack.c.h.b16 %v270
        %v732 = vunpack.c.l.b16 %v271
        %v733 = vunpack.c.h.b16 %v271
        %v734 = vunpack.c.l.b16 %v272
        %v735 = vunpack.c.h.b16 %v272
        %v736 = vunpack.c.l.b16 %v273
        %v737 = vunpack.c.h.b16 %v273
        %v738 = vunpack.c.l.b16 %v274
        %v739 = vunpack.c.h.b16 %v274
        %v740 = vunpack.c.l.b16 %v275
        %v741 = vunpack.c.h.b16 %v275
        %v742 = vunpack.c.l.b16 %v276
        %v743 = vunpack.c.h.b16 %v276
        %v744 = vunpack.c.l.b16 %v277
        %v745 = vunpack.c.h.b16 %v277
        %v746 = vunpack.c.l.b16 %v278
        %v747 = vunpack.c.h.b16 %v278
        %v748 = vunpack.c.l.b16 %v279
        %v749 = vunpack.c.h.b16 %v279
        %v750 = vpack.c.b16 %v688, %v686
        %v751 = vpack.c.b16 %v689, %v687
        %v752 = vpack.c.b16 %v692, %v690
        %v753 = vpack.c.b16 %v693, %v691
        %v754 = vpack.c.b16 %v696, %v694
        %v755 = vpack.c.b16 %v697, %v695
        %v756 = vpack.c.b16 %v700, %v698
        %v757 = vpack.c.b16 %v701, %v699
        %v758 = vpack.c.b16 %v704, %v702
        %v759 = vpack.c.b16 %v705, %v703
        %v760 = vpack.c.b16 %v708, %v706
        %v761 = vpack.c.b16 %v709, %v707
        %v762 = vpack.c.b16 %v712, %v710
        %v763 = vpack.c.b16 %v713, %v711
        %v764 = vpack.c.b16 %v716, %v714
        %v765 = vpack.c.b16 %v717, %v715
        %v766 = vpack.c.b16 %v720, %v718
        %v767 = vpack.c.b16 %v721, %v719
        %v768 = vpack.c.b16 %v724, %v722
        %v769 = vpack.c.b16 %v725, %v723
        %v770 = vpack.c.b16 %v728, %v726
        %v771 = vpack.c.b16 %v729, %v727
        %v772 = vpack.c.b16 %v732, %v730
        %v773 = vpack.c.b16 %v733, %v731
        %v774 = vpack.c.b16 %v736, %v734
        %v775 = vpack.c.b16 %v737, %v735
        %v776 = vpack.c.b16 %v740, %v738
        %v777 = vpack.c.b16 %v741, %v739
        %v778 = vpack.c.b16 %v744, %v742
        %v779 = vpack.c.b16 %v745, %v743
        %v780 = vpack.c.b16 %v748, %v746
        %v781 = vpack.c.b16 %v749, %v747
        %814 = vmatprep.subr.bf16.mxu0 0
        %815 = vmatpush1.bf16.msra.mxu0 %v633
        %816 = vmatprep.subr.bf16.mxu0 0
        %817 = vmatpush1.bf16.msra.mxu0 %v634
        %818 = vmatprep.subr.bf16.mxu0 0
        %819 = vmatpush1.bf16.msra.mxu0 %v635
        %820 = vmatprep.subr.bf16.mxu0 0
        %821 = vmatpush1.bf16.msra.mxu0 %v636
        %822 = vmatprep.subr.bf16.mxu0 0
        %823 = vmatpush1.bf16.msra.mxu0 %v637
        %824 = vmatprep.subr.bf16.mxu0 0
        %825 = vmatpush1.bf16.msra.mxu0 %v638
        %826 = vmatprep.subr.bf16.mxu0 0
        %827 = vmatpush1.bf16.msra.mxu0 %v639
        %828 = vmatprep.subr.bf16.mxu0 0
        %829 = vmatpush1.bf16.msra.mxu0 %v640
        %830 = vmatprep.subr.bf16.mxu0 0
        %831 = vmatpush1.bf16.msra.mxu0 %v641
        %832 = vmatprep.subr.bf16.mxu0 0
        %833 = vmatpush1.bf16.msra.mxu0 %v642
        %834 = vmatprep.subr.bf16.mxu0 0
        %835 = vmatpush1.bf16.msra.mxu0 %v643
        %836 = vmatprep.subr.bf16.mxu0 0
        %837 = vmatpush1.bf16.msra.mxu0 %v644
        %838 = vmatprep.subr.bf16.mxu0 0
        %839 = vmatpush1.bf16.msra.mxu0 %v645
        %840 = vmatprep.subr.bf16.mxu0 0
        %841 = vmatpush1.bf16.msra.mxu0 %v646
        %842 = vmatprep.subr.bf16.mxu0 0
        %843 = vmatpush1.bf16.msra.mxu0 %v647
        %844 = vmatprep.subr.bf16.mxu0 0
        %845 = vmatpush1.bf16.msra.mxu0 %v648
        %846 = vmatprep.mubr.bf16.mxu0 %v751
        %847 = vmatmul.mubr.bf16.gmra.mrb[0].mxu0 %v750
        %v848 = vpop.f32.mrb[0].mxu0
        %v849 = vadd.f32 %v653, %v848
        %v850 = vpop.f32.mrb[0].mxu0
        %v851 = vpop.f32.mrb[0].mxu0
        %v852 = vadd.f32 %v653, %v851
        %v853 = vpop.f32.mrb[0].mxu0
        %854 = vmatprep.mubr.bf16.mxu0 %v753
        %855 = vmatmul.mubr.bf16.gmra.mrb[0].mxu0 %v752
        %v856 = vpop.f32.mrb[0].mxu0
        %v857 = vadd.f32 %v653, %v856
        %v858 = vpop.f32.mrb[0].mxu0
        %v859 = vpop.f32.mrb[0].mxu0
        %v860 = vadd.f32 %v653, %v859
        %v861 = vpop.f32.mrb[0].mxu0
        %862 = vmatprep.mubr.bf16.mxu0 %v755
        %863 = vmatmul.mubr.bf16.gmra.mrb[0].mxu0 %v754
        %v864 = vpop.f32.mrb[0].mxu0
        %v865 = vadd.f32 %v653, %v864
        %v866 = vpop.f32.mrb[0].mxu0
        %v867 = vpop.f32.mrb[0].mxu0
        %v868 = vadd.f32 %v653, %v867
        %v869 = vpop.f32.mrb[0].mxu0
        %870 = vmatprep.mubr.bf16.mxu0 %v757
        %871 = vmatmul.mubr.bf16.gmra.mrb[0].mxu0 %v756
        %v872 = vpop.f32.mrb[0].mxu0
        %v873 = vadd.f32 %v653, %v872
        %v874 = vpop.f32.mrb[0].mxu0
        %v875 = vpop.f32.mrb[0].mxu0
        %v876 = vadd.f32 %v653, %v875
        %v877 = vpop.f32.mrb[0].mxu0
        %878 = vmatprep.mubr.bf16.mxu0 %v759
        %879 = vmatmul.mubr.bf16.gmra.mrb[0].mxu0 %v758
        %v880 = vpop.f32.mrb[0].mxu0
        %v881 = vadd.f32 %v653, %v880
        %v882 = vpop.f32.mrb[0].mxu0
        %v883 = vpop.f32.mrb[0].mxu0
        %v884 = vadd.f32 %v653, %v883
        %v885 = vpop.f32.mrb[0].mxu0
        %886 = vmatprep.mubr.bf16.mxu0 %v761
        %887 = vmatmul.mubr.bf16.gmra.mrb[0].mxu0 %v760
        %v888 = vpop.f32.mrb[0].mxu0
        %v889 = vadd.f32 %v653, %v888
        %v890 = vpop.f32.mrb[0].mxu0
        %v891 = vpop.f32.mrb[0].mxu0
        %v892 = vadd.f32 %v653, %v891
        %v893 = vpop.f32.mrb[0].mxu0
        %894 = vmatprep.mubr.bf16.mxu0 %v763
        %895 = vmatmul.mubr.bf16.gmra.mrb[0].mxu0 %v762
        %v896 = vpop.f32.mrb[0].mxu0
        %v897 = vadd.f32 %v653, %v896
        %v898 = vpop.f32.mrb[0].mxu0
        %v899 = vpop.f32.mrb[0].mxu0
        %v900 = vadd.f32 %v653, %v899
        %v901 = vpop.f32.mrb[0].mxu0
        %902 = vmatprep.mubr.bf16.mxu0 %v765
        %903 = vmatmul.mubr.bf16.gmra.mrb[0].mxu0 %v764
        %v904 = vpop.f32.mrb[0].mxu0
        %v905 = vadd.f32 %v653, %v904
        %v906 = vpop.f32.mrb[0].mxu0
        %v907 = vpop.f32.mrb[0].mxu0
        %v908 = vadd.f32 %v653, %v907
        %v909 = vpop.f32.mrb[0].mxu0
        %910 = vmatprep.mubr.bf16.mxu0 %v767
        %911 = vmatmul.mubr.bf16.gmra.mrb[0].mxu0 %v766
        %v912 = vpop.f32.mrb[0].mxu0
        %v913 = vadd.f32 %v653, %v912
        %v914 = vpop.f32.mrb[0].mxu0
        %v915 = vpop.f32.mrb[0].mxu0
        %v916 = vadd.f32 %v653, %v915
        %v917 = vpop.f32.mrb[0].mxu0
        %918 = vmatprep.mubr.bf16.mxu0 %v769
        %919 = vmatmul.mubr.bf16.gmra.mrb[0].mxu0 %v768
        %v920 = vpop.f32.mrb[0].mxu0
        %v921 = vadd.f32 %v653, %v920
        %v922 = vpop.f32.mrb[0].mxu0
        %v923 = vpop.f32.mrb[0].mxu0
        %v924 = vadd.f32 %v653, %v923
        %v925 = vpop.f32.mrb[0].mxu0
        %926 = vmatprep.mubr.bf16.mxu0 %v771
        %927 = vmatmul.mubr.bf16.gmra.mrb[0].mxu0 %v770
        %v928 = vpop.f32.mrb[0].mxu0
        %v929 = vadd.f32 %v653, %v928
        %v930 = vpop.f32.mrb[0].mxu0
        %v931 = vpop.f32.mrb[0].mxu0
        %v932 = vadd.f32 %v653, %v931
        %v933 = vpop.f32.mrb[0].mxu0
        %934 = vmatprep.mubr.bf16.mxu0 %v773
        %935 = vmatmul.mubr.bf16.gmra.mrb[0].mxu0 %v772
        %v936 = vpop.f32.mrb[0].mxu0
        %v937 = vadd.f32 %v653, %v936
        %v938 = vpop.f32.mrb[0].mxu0
        %v939 = vpop.f32.mrb[0].mxu0
        %v940 = vadd.f32 %v653, %v939
        %v941 = vpop.f32.mrb[0].mxu0
        %942 = vmatprep.mubr.bf16.mxu0 %v775
        %943 = vmatmul.mubr.bf16.gmra.mrb[0].mxu0 %v774
        %v944 = vpop.f32.mrb[0].mxu0
        %v945 = vadd.f32 %v653, %v944
        %v946 = vpop.f32.mrb[0].mxu0
        %v947 = vpop.f32.mrb[0].mxu0
        %v948 = vadd.f32 %v653, %v947
        %v949 = vpop.f32.mrb[0].mxu0
        %950 = vmatprep.mubr.bf16.mxu0 %v777
        %951 = vmatmul.mubr.bf16.gmra.mrb[0].mxu0 %v776
        %v952 = vpop.f32.mrb[0].mxu0
        %v953 = vadd.f32 %v653, %v952
        %v954 = vpop.f32.mrb[0].mxu0
        %v955 = vpop.f32.mrb[0].mxu0
        %v956 = vadd.f32 %v653, %v955
        %v957 = vpop.f32.mrb[0].mxu0
        %958 = vmatprep.mubr.bf16.mxu0 %v779
        %959 = vmatmul.mubr.bf16.gmra.mrb[0].mxu0 %v778
        %v960 = vpop.f32.mrb[0].mxu0
        %v961 = vadd.f32 %v653, %v960
        %v962 = vpop.f32.mrb[0].mxu0
        %v963 = vpop.f32.mrb[0].mxu0
        %v964 = vadd.f32 %v653, %v963
        %v965 = vpop.f32.mrb[0].mxu0
        %966 = vmatprep.mubr.bf16.mxu0 %v781
        %967 = vmatmul.mubr.bf16.gmra.mrb[0].mxu0 %v780
        %v968 = vpop.f32.mrb[0].mxu0
        %v969 = vadd.f32 %v653, %v968
        %v970 = vpop.f32.mrb[0].mxu0
        %v971 = vpop.f32.mrb[0].mxu0
        %v972 = vadd.f32 %v653, %v971
        %v973 = vpop.f32.mrb[0].mxu0
        %974 = vdwg.mxu0
        %v975 = vmax.f32 %v849, 0.0
        %v976 = vmax.f32 %v852, 0.0
        %v977 = vmax.f32 %v857, 0.0
        %v978 = vmax.f32 %v860, 0.0
        %v979 = vmax.f32 %v865, 0.0
        %v980 = vmax.f32 %v868, 0.0
        %v981 = vmax.f32 %v873, 0.0
        %v982 = vmax.f32 %v876, 0.0
        %v983 = vmax.f32 %v881, 0.0
        %v984 = vmax.f32 %v884, 0.0
        %v985 = vmax.f32 %v889, 0.0
        %v986 = vmax.f32 %v892, 0.0
        %v987 = vmax.f32 %v897, 0.0
        %v988 = vmax.f32 %v900, 0.0
        %v989 = vmax.f32 %v905, 0.0
        %v990 = vmax.f32 %v908, 0.0
        %v991 = vmax.f32 %v913, 0.0
        %v992 = vmax.f32 %v916, 0.0
        %v993 = vmax.f32 %v921, 0.0
        %v994 = vmax.f32 %v924, 0.0
        %v995 = vmax.f32 %v929, 0.0
        %v996 = vmax.f32 %v932, 0.0
        %v997 = vmax.f32 %v937, 0.0
        %v998 = vmax.f32 %v940, 0.0
        %v999 = vmax.f32 %v945, 0.0
        %v1000 = vmax.f32 %v948, 0.0
        %v1001 = vmax.f32 %v953, 0.0
        %v1002 = vmax.f32 %v956, 0.0
        %v1003 = vmax.f32 %v961, 0.0
        %v1004 = vmax.f32 %v964, 0.0
        %v1005 = vmax.f32 %v969, 0.0
        %v1006 = vmax.f32 %v972, 0.0
        %v1007 = vpack.c.bf16 %v976, %v975
        %v1008 = vpack.c.bf16 %v978, %v977
        %v1009 = vpack.c.bf16 %v980, %v979
        %v1010 = vpack.c.bf16 %v982, %v981
        %v1011 = vpack.c.bf16 %v984, %v983
        %v1012 = vpack.c.bf16 %v986, %v985
        %v1013 = vpack.c.bf16 %v988, %v987
        %v1014 = vpack.c.bf16 %v990, %v989
        %v1015 = vpack.c.bf16 %v992, %v991
        %v1016 = vpack.c.bf16 %v994, %v993
        %v1017 = vpack.c.bf16 %v996, %v995
        %v1018 = vpack.c.bf16 %v998, %v997
        %v1019 = vpack.c.bf16 %v1000, %v999
        %v1020 = vpack.c.bf16 %v1002, %v1001
        %v1021 = vpack.c.bf16 %v1004, %v1003
        %v1022 = vpack.c.bf16 %v1006, %v1005
        %s1023 = scalar_lea.vmem [#allocation7], 64
        %v1024 = vld [vmem:[%s1023] sm:$0xf]
        %v1025 = vld [vmem:[%s1023 + $0x4] sm:$0xf]
        %v1026 = vld [vmem:[%s1023 + $0x8] sm:$0xf]
        %v1027 = vld [vmem:[%s1023 + $0xc] sm:$0xf]
        %v1028 = vld [vmem:[%s1023 + $0x10] sm:$0xf]
        %v1029 = vld [vmem:[%s1023 + $0x14] sm:$0xf]
        %v1030 = vld [vmem:[%s1023 + $0x18] sm:$0xf]
        %v1031 = vld [vmem:[%s1023 + $0x1c] sm:$0xf]
        %v1032 = vld [vmem:[%s1023 + $0x20] sm:$0xf]
        %v1033 = vld [vmem:[%s1023 + $0x24] sm:$0xf]
        %v1034 = vld [vmem:[%s1023 + $0x28] sm:$0xf]
        %v1035 = vld [vmem:[%s1023 + $0x2c] sm:$0xf]
        %v1036 = vld [vmem:[%s1023 + $0x30] sm:$0xf]
        %v1037 = vld [vmem:[%s1023 + $0x34] sm:$0xf]
        %v1038 = vld [vmem:[%s1023 + $0x38] sm:$0xf]
        %v1039 = vld [vmem:[%s1023 + $0x3c] sm:$0xf]
        %v1056 = vunpack.c.l.b16 %v1024
        %v1057 = vunpack.c.l.b16 %v1025
        %v1058 = vunpack.c.l.b16 %v1026
        %v1059 = vunpack.c.l.b16 %v1027
        %v1060 = vunpack.c.l.b16 %v1028
        %v1061 = vunpack.c.l.b16 %v1029
        %v1062 = vunpack.c.l.b16 %v1030
        %v1063 = vunpack.c.l.b16 %v1031
        %v1064 = vunpack.c.l.b16 %v1032
        %v1065 = vunpack.c.l.b16 %v1033
        %v1066 = vunpack.c.l.b16 %v1034
        %v1067 = vunpack.c.l.b16 %v1035
        %v1068 = vunpack.c.l.b16 %v1036
        %v1069 = vunpack.c.l.b16 %v1037
        %v1070 = vunpack.c.l.b16 %v1038
        %v1071 = vunpack.c.l.b16 %v1039
        %v1072 = vpack.c.b16 %v1057, %v1056
        %v1073 = vpack.c.b16 %v1059, %v1058
        %v1074 = vpack.c.b16 %v1061, %v1060
        %v1075 = vpack.c.b16 %v1063, %v1062
        %v1076 = vpack.c.b16 %v1065, %v1064
        %v1077 = vpack.c.b16 %v1067, %v1066
        %v1078 = vpack.c.b16 %v1069, %v1068
        %v1079 = vpack.c.b16 %v1071, %v1070
        %1088 = vmatprep.subr.bf16.mxu0 0
        %1089 = vmatpush1.bf16.msra.mxu0 %v1072
        %1090 = vmatprep.subr.bf16.mxu0 0
        %1091 = vmatpush1.bf16.msra.mxu0 %v1073
        %1092 = vmatprep.subr.bf16.mxu0 0
        %1093 = vmatpush1.bf16.msra.mxu0 %v1074
        %1094 = vmatprep.subr.bf16.mxu0 0
        %1095 = vmatpush1.bf16.msra.mxu0 %v1075
        %1096 = vmatprep.subr.bf16.mxu0 0
        %1097 = vmatpush1.bf16.msra.mxu0 %v1076
        %1098 = vmatprep.subr.bf16.mxu0 0
        %1099 = vmatpush1.bf16.msra.mxu0 %v1077
        %1100 = vmatprep.subr.bf16.mxu0 0
        %1101 = vmatpush1.bf16.msra.mxu0 %v1078
        %1102 = vmatprep.subr.bf16.mxu0 0
        %1103 = vmatpush1.bf16.msra.mxu0 %v1079
        %1104 = vmatprep.subr.bf16.mxu0 0
        %1105 = vmatpush1.bf16.msra.mxu0 0
        %1106 = vmatprep.subr.bf16.mxu0 0
        %1107 = vmatpush1.bf16.msra.mxu0 0
        %1108 = vmatprep.subr.bf16.mxu0 0
        %1109 = vmatpush1.bf16.msra.mxu0 0
        %1110 = vmatprep.subr.bf16.mxu0 0
        %1111 = vmatpush1.bf16.msra.mxu0 0
        %1112 = vmatprep.subr.bf16.mxu0 0
        %1113 = vmatpush1.bf16.msra.mxu0 0
        %1114 = vmatprep.subr.bf16.mxu0 0
        %1115 = vmatpush1.bf16.msra.mxu0 0
        %1116 = vmatprep.subr.bf16.mxu0 0
        %1117 = vmatpush1.bf16.msra.mxu0 0
        %1118 = vmatprep.subr.bf16.mxu0 0
        %1119 = vmatpush1.bf16.msra.mxu0 0
        %1120 = vmatprep.mubr.bf16.mxu0 0
        %1121 = vmatmul.mubr.bf16.gmra.mrb[0].mxu0 %v1007
        %v1122 = vpop.f32.mrb[0].mxu0
        %v1123 = vadd.f32 0.0, %v1122
        %v1124 = vpop.f32.mrb[0].mxu0
        %v1125 = vpop.f32.mrb[0].mxu0
        %v1126 = vadd.f32 0.0, %v1125
        %v1127 = vpop.f32.mrb[0].mxu0
        %1128 = vmatprep.mubr.bf16.mxu0 0
        %1129 = vmatmul.mubr.bf16.gmra.mrb[0].mxu0 %v1008
        %v1130 = vpop.f32.mrb[0].mxu0
        %v1131 = vadd.f32 0.0, %v1130
        %v1132 = vpop.f32.mrb[0].mxu0
        %v1133 = vpop.f32.mrb[0].mxu0
        %v1134 = vadd.f32 0.0, %v1133
        %v1135 = vpop.f32.mrb[0].mxu0
        %1136 = vmatprep.mubr.bf16.mxu0 0
        %1137 = vmatmul.mubr.bf16.gmra.mrb[0].mxu0 %v1009
        %v1138 = vpop.f32.mrb[0].mxu0
        %v1139 = vadd.f32 0.0, %v1138
        %v1140 = vpop.f32.mrb[0].mxu0
        %v1141 = vpop.f32.mrb[0].mxu0
        %v1142 = vadd.f32 0.0, %v1141
        %v1143 = vpop.f32.mrb[0].mxu0
        %1144 = vmatprep.mubr.bf16.mxu0 0
        %1145 = vmatmul.mubr.bf16.gmra.mrb[0].mxu0 %v1010
        %v1146 = vpop.f32.mrb[0].mxu0
        %v1147 = vadd.f32 0.0, %v1146
        %v1148 = vpop.f32.mrb[0].mxu0
        %v1149 = vpop.f32.mrb[0].mxu0
        %v1150 = vadd.f32 0.0, %v1149
        %v1151 = vpop.f32.mrb[0].mxu0
        %1152 = vmatprep.mubr.bf16.mxu0 0
        %1153 = vmatmul.mubr.bf16.gmra.mrb[0].mxu0 %v1011
        %v1154 = vpop.f32.mrb[0].mxu0
        %v1155 = vadd.f32 0.0, %v1154
        %v1156 = vpop.f32.mrb[0].mxu0
        %v1157 = vpop.f32.mrb[0].mxu0
        %v1158 = vadd.f32 0.0, %v1157
        %v1159 = vpop.f32.mrb[0].mxu0
        %1160 = vmatprep.mubr.bf16.mxu0 0
        %1161 = vmatmul.mubr.bf16.gmra.mrb[0].mxu0 %v1012
        %v1162 = vpop.f32.mrb[0].mxu0
        %v1163 = vadd.f32 0.0, %v1162
        %v1164 = vpop.f32.mrb[0].mxu0
        %v1165 = vpop.f32.mrb[0].mxu0
        %v1166 = vadd.f32 0.0, %v1165
        %v1167 = vpop.f32.mrb[0].mxu0
        %1168 = vmatprep.mubr.bf16.mxu0 0
        %1169 = vmatmul.mubr.bf16.gmra.mrb[0].mxu0 %v1013
        %v1170 = vpop.f32.mrb[0].mxu0
        %v1171 = vadd.f32 0.0, %v1170
        %v1172 = vpop.f32.mrb[0].mxu0
        %v1173 = vpop.f32.mrb[0].mxu0
        %v1174 = vadd.f32 0.0, %v1173
        %v1175 = vpop.f32.mrb[0].mxu0
        %1176 = vmatprep.mubr.bf16.mxu0 0
        %1177 = vmatmul.mubr.bf16.gmra.mrb[0].mxu0 %v1014
        %v1178 = vpop.f32.mrb[0].mxu0
        %v1179 = vadd.f32 0.0, %v1178
        %v1180 = vpop.f32.mrb[0].mxu0
        %v1181 = vpop.f32.mrb[0].mxu0
        %v1182 = vadd.f32 0.0, %v1181
        %v1183 = vpop.f32.mrb[0].mxu0
        %1184 = vmatprep.mubr.bf16.mxu0 0
        %1185 = vmatmul.mubr.bf16.gmra.mrb[0].mxu0 %v1015
        %v1186 = vpop.f32.mrb[0].mxu0
        %v1187 = vadd.f32 0.0, %v1186
        %v1188 = vpop.f32.mrb[0].mxu0
        %v1189 = vpop.f32.mrb[0].mxu0
        %v1190 = vadd.f32 0.0, %v1189
        %v1191 = vpop.f32.mrb[0].mxu0
        %1192 = vmatprep.mubr.bf16.mxu0 0
        %1193 = vmatmul.mubr.bf16.gmra.mrb[0].mxu0 %v1016
        %v1194 = vpop.f32.mrb[0].mxu0
        %v1195 = vadd.f32 0.0, %v1194
        %v1196 = vpop.f32.mrb[0].mxu0
        %v1197 = vpop.f32.mrb[0].mxu0
        %v1198 = vadd.f32 0.0, %v1197
        %v1199 = vpop.f32.mrb[0].mxu0
        %1200 = vmatprep.mubr.bf16.mxu0 0
        %1201 = vmatmul.mubr.bf16.gmra.mrb[0].mxu0 %v1017
        %v1202 = vpop.f32.mrb[0].mxu0
        %v1203 = vadd.f32 0.0, %v1202
        %v1204 = vpop.f32.mrb[0].mxu0
        %v1205 = vpop.f32.mrb[0].mxu0
        %v1206 = vadd.f32 0.0, %v1205
        %v1207 = vpop.f32.mrb[0].mxu0
        %1208 = vmatprep.mubr.bf16.mxu0 0
        %1209 = vmatmul.mubr.bf16.gmra.mrb[0].mxu0 %v1018
        %v1210 = vpop.f32.mrb[0].mxu0
        %v1211 = vadd.f32 0.0, %v1210
        %v1212 = vpop.f32.mrb[0].mxu0
        %v1213 = vpop.f32.mrb[0].mxu0
        %v1214 = vadd.f32 0.0, %v1213
        %v1215 = vpop.f32.mrb[0].mxu0
        %1216 = vmatprep.mubr.bf16.mxu0 0
        %1217 = vmatmul.mubr.bf16.gmra.mrb[0].mxu0 %v1019
        %v1218 = vpop.f32.mrb[0].mxu0
        %v1219 = vadd.f32 0.0, %v1218
        %v1220 = vpop.f32.mrb[0].mxu0
        %v1221 = vpop.f32.mrb[0].mxu0
        %v1222 = vadd.f32 0.0, %v1221
        %v1223 = vpop.f32.mrb[0].mxu0
        %1224 = vmatprep.mubr.bf16.mxu0 0
        %1225 = vmatmul.mubr.bf16.gmra.mrb[0].mxu0 %v1020
        %v1226 = vpop.f32.mrb[0].mxu0
        %v1227 = vadd.f32 0.0, %v1226
        %v1228 = vpop.f32.mrb[0].mxu0
        %v1229 = vpop.f32.mrb[0].mxu0
        %v1230 = vadd.f32 0.0, %v1229
        %v1231 = vpop.f32.mrb[0].mxu0
        %1232 = vmatprep.mubr.bf16.mxu0 0
        %1233 = vmatmul.mubr.bf16.gmra.mrb[0].mxu0 %v1021
        %v1234 = vpop.f32.mrb[0].mxu0
        %v1235 = vadd.f32 0.0, %v1234
        %v1236 = vpop.f32.mrb[0].mxu0
        %v1237 = vpop.f32.mrb[0].mxu0
        %v1238 = vadd.f32 0.0, %v1237
        %v1239 = vpop.f32.mrb[0].mxu0
        %1240 = vmatprep.mubr.bf16.mxu0 0
        %1241 = vmatmul.mubr.bf16.gmra.mrb[0].mxu0 %v1022
        %v1242 = vpop.f32.mrb[0].mxu0
        %v1243 = vadd.f32 0.0, %v1242
        %v1244 = vpop.f32.mrb[0].mxu0
        %v1245 = vpop.f32.mrb[0].mxu0
        %v1246 = vadd.f32 0.0, %v1245
        %v1247 = vpop.f32.mrb[0].mxu0
        %1248 = vdwg.mxu0
        %v1249 = vpack.c.bf16 %v1126, %v1123
        %v1250 = vpack.c.bf16 %v1134, %v1131
        %v1251 = vpack.c.bf16 %v1142, %v1139
        %v1252 = vpack.c.bf16 %v1150, %v1147
        %v1253 = vpack.c.bf16 %v1158, %v1155
        %v1254 = vpack.c.bf16 %v1166, %v1163
        %v1255 = vpack.c.bf16 %v1174, %v1171
        %v1256 = vpack.c.bf16 %v1182, %v1179
        %v1257 = vpack.c.bf16 %v1190, %v1187
        %v1258 = vpack.c.bf16 %v1198, %v1195
        %v1259 = vpack.c.bf16 %v1206, %v1203
        %v1260 = vpack.c.bf16 %v1214, %v1211
        %v1261 = vpack.c.bf16 %v1222, %v1219
        %v1262 = vpack.c.bf16 %v1230, %v1227
        %v1263 = vpack.c.bf16 %v1238, %v1235
        %v1264 = vpack.c.bf16 %v1246, %v1243
        %v1265 = vld [vmem:[%s3 + $0x1] sm:$0x1]
        %v1266 = vlaneseq
        %v1267 = vshrl.u32 %v1266, 7
        %v1268 = vsub.s32 0, %v1267
        %v1269 = vrot.slane %v1265, %v1268
        %1270 = vmatprep.subr.bf16.mxu0 0
        %1271 = vmatpush1.bf16.msra.mxu0 %v1249
        %1272 = vmatprep.subr.bf16.mxu0 0
        %1273 = vmatpush1.bf16.msra.mxu0 %v1250
        %1274 = vmatprep.subr.bf16.mxu0 0
        %1275 = vmatpush1.bf16.msra.mxu0 %v1251
        %1276 = vmatprep.subr.bf16.mxu0 0
        %1277 = vmatpush1.bf16.msra.mxu0 %v1252
        %1278 = vmatprep.subr.bf16.mxu0 0
        %1279 = vmatpush1.bf16.msra.mxu0 %v1253
        %1280 = vmatprep.subr.bf16.mxu0 0
        %1281 = vmatpush1.bf16.msra.mxu0 %v1254
        %1282 = vmatprep.subr.bf16.mxu0 0
        %1283 = vmatpush1.bf16.msra.mxu0 %v1255
        %1284 = vmatprep.subr.bf16.mxu0 0
        %1285 = vmatpush1.bf16.msra.mxu0 %v1256
        %1286 = vmatprep.subr.bf16.mxu0 0
        %1287 = vmatpush1.bf16.msra.mxu0 %v1257
        %1288 = vmatprep.subr.bf16.mxu0 0
        %1289 = vmatpush1.bf16.msra.mxu0 %v1258
        %1290 = vmatprep.subr.bf16.mxu0 0
        %1291 = vmatpush1.bf16.msra.mxu0 %v1259
        %1292 = vmatprep.subr.bf16.mxu0 0
        %1293 = vmatpush1.bf16.msra.mxu0 %v1260
        %1294 = vmatprep.subr.bf16.mxu0 0
        %1295 = vmatpush1.bf16.msra.mxu0 %v1261
        %1296 = vmatprep.subr.bf16.mxu0 0
        %1297 = vmatpush1.bf16.msra.mxu0 %v1262
        %1298 = vmatprep.subr.bf16.mxu0 0
        %1299 = vmatpush1.bf16.msra.mxu0 %v1263
        %1300 = vmatprep.subr.bf16.mxu0 0
        %1301 = vmatpush1.bf16.msra.mxu0 %v1264
        %1302 = vmatprep.mubr.bf16.mxu0 %v751
        %1303 = vmatmul.mubr.bf16.gmra.mrb[0].mxu0 %v750
        %v1304 = vpop.f32.mrb[0].mxu0
        %v1305 = vadd.f32 %v1269, %v1304
        %v1306 = vpop.f32.mrb[0].mxu0
        %v1307 = vpop.f32.mrb[0].mxu0
        %v1308 = vadd.f32 %v1269, %v1307
        %v1309 = vpop.f32.mrb[0].mxu0
        %1310 = vmatprep.mubr.bf16.mxu0 %v753
        %1311 = vmatmul.mubr.bf16.gmra.mrb[0].mxu0 %v752
        %v1312 = vpop.f32.mrb[0].mxu0
        %v1313 = vadd.f32 %v1269, %v1312
        %v1314 = vpop.f32.mrb[0].mxu0
        %v1315 = vpop.f32.mrb[0].mxu0
        %v1316 = vadd.f32 %v1269, %v1315
        %v1317 = vpop.f32.mrb[0].mxu0
        %1318 = vmatprep.mubr.bf16.mxu0 %v755
        %1319 = vmatmul.mubr.bf16.gmra.mrb[0].mxu0 %v754
        %v1320 = vpop.f32.mrb[0].mxu0
        %v1321 = vadd.f32 %v1269, %v1320
        %v1322 = vpop.f32.mrb[0].mxu0
        %v1323 = vpop.f32.mrb[0].mxu0
        %v1324 = vadd.f32 %v1269, %v1323
        %v1325 = vpop.f32.mrb[0].mxu0
        %1326 = vmatprep.mubr.bf16.mxu0 %v757
        %1327 = vmatmul.mubr.bf16.gmra.mrb[0].mxu0 %v756
        %v1328 = vpop.f32.mrb[0].mxu0
        %v1329 = vadd.f32 %v1269, %v1328
        %v1330 = vpop.f32.mrb[0].mxu0
        %v1331 = vpop.f32.mrb[0].mxu0
        %v1332 = vadd.f32 %v1269, %v1331
        %v1333 = vpop.f32.mrb[0].mxu0
        %1334 = vmatprep.mubr.bf16.mxu0 %v759
        %1335 = vmatmul.mubr.bf16.gmra.mrb[0].mxu0 %v758
        %v1336 = vpop.f32.mrb[0].mxu0
        %v1337 = vadd.f32 %v1269, %v1336
        %v1338 = vpop.f32.mrb[0].mxu0
        %v1339 = vpop.f32.mrb[0].mxu0
        %v1340 = vadd.f32 %v1269, %v1339
        %v1341 = vpop.f32.mrb[0].mxu0
        %1342 = vmatprep.mubr.bf16.mxu0 %v761
        %1343 = vmatmul.mubr.bf16.gmra.mrb[0].mxu0 %v760
        %v1344 = vpop.f32.mrb[0].mxu0
        %v1345 = vadd.f32 %v1269, %v1344
        %v1346 = vpop.f32.mrb[0].mxu0
        %v1347 = vpop.f32.mrb[0].mxu0
        %v1348 = vadd.f32 %v1269, %v1347
        %v1349 = vpop.f32.mrb[0].mxu0
        %1350 = vmatprep.mubr.bf16.mxu0 %v763
        %1351 = vmatmul.mubr.bf16.gmra.mrb[0].mxu0 %v762
        %v1352 = vpop.f32.mrb[0].mxu0
        %v1353 = vadd.f32 %v1269, %v1352
        %v1354 = vpop.f32.mrb[0].mxu0
        %v1355 = vpop.f32.mrb[0].mxu0
        %v1356 = vadd.f32 %v1269, %v1355
        %v1357 = vpop.f32.mrb[0].mxu0
        %1358 = vmatprep.mubr.bf16.mxu0 %v765
        %1359 = vmatmul.mubr.bf16.gmra.mrb[0].mxu0 %v764
        %v1360 = vpop.f32.mrb[0].mxu0
        %v1361 = vadd.f32 %v1269, %v1360
        %v1362 = vpop.f32.mrb[0].mxu0
        %v1363 = vpop.f32.mrb[0].mxu0
        %v1364 = vadd.f32 %v1269, %v1363
        %v1365 = vpop.f32.mrb[0].mxu0
        %1366 = vmatprep.mubr.bf16.mxu0 %v767
        %1367 = vmatmul.mubr.bf16.gmra.mrb[0].mxu0 %v766
        %v1368 = vpop.f32.mrb[0].mxu0
        %v1369 = vadd.f32 %v1269, %v1368
        %v1370 = vpop.f32.mrb[0].mxu0
        %v1371 = vpop.f32.mrb[0].mxu0
        %v1372 = vadd.f32 %v1269, %v1371
        %v1373 = vpop.f32.mrb[0].mxu0
        %1374 = vmatprep.mubr.bf16.mxu0 %v769
        %1375 = vmatmul.mubr.bf16.gmra.mrb[0].mxu0 %v768
        %v1376 = vpop.f32.mrb[0].mxu0
        %v1377 = vadd.f32 %v1269, %v1376
        %v1378 = vpop.f32.mrb[0].mxu0
        %v1379 = vpop.f32.mrb[0].mxu0
        %v1380 = vadd.f32 %v1269, %v1379
        %v1381 = vpop.f32.mrb[0].mxu0
        %1382 = vmatprep.mubr.bf16.mxu0 %v771
        %1383 = vmatmul.mubr.bf16.gmra.mrb[0].mxu0 %v770
        %v1384 = vpop.f32.mrb[0].mxu0
        %v1385 = vadd.f32 %v1269, %v1384
        %v1386 = vpop.f32.mrb[0].mxu0
        %v1387 = vpop.f32.mrb[0].mxu0
        %v1388 = vadd.f32 %v1269, %v1387
        %v1389 = vpop.f32.mrb[0].mxu0
        %1390 = vmatprep.mubr.bf16.mxu0 %v773
        %1391 = vmatmul.mubr.bf16.gmra.mrb[0].mxu0 %v772
        %v1392 = vpop.f32.mrb[0].mxu0
        %v1393 = vadd.f32 %v1269, %v1392
        %v1394 = vpop.f32.mrb[0].mxu0
        %v1395 = vpop.f32.mrb[0].mxu0
        %v1396 = vadd.f32 %v1269, %v1395
        %v1397 = vpop.f32.mrb[0].mxu0
        %1398 = vmatprep.mubr.bf16.mxu0 %v775
        %1399 = vmatmul.mubr.bf16.gmra.mrb[0].mxu0 %v774
        %v1400 = vpop.f32.mrb[0].mxu0
        %v1401 = vadd.f32 %v1269, %v1400
        %v1402 = vpop.f32.mrb[0].mxu0
        %v1403 = vpop.f32.mrb[0].mxu0
        %v1404 = vadd.f32 %v1269, %v1403
        %v1405 = vpop.f32.mrb[0].mxu0
        %1406 = vmatprep.mubr.bf16.mxu0 %v777
        %1407 = vmatmul.mubr.bf16.gmra.mrb[0].mxu0 %v776
        %v1408 = vpop.f32.mrb[0].mxu0
        %v1409 = vadd.f32 %v1269, %v1408
        %v1410 = vpop.f32.mrb[0].mxu0
        %v1411 = vpop.f32.mrb[0].mxu0
        %v1412 = vadd.f32 %v1269, %v1411
        %v1413 = vpop.f32.mrb[0].mxu0
        %1414 = vmatprep.mubr.bf16.mxu0 %v779
        %1415 = vmatmul.mubr.bf16.gmra.mrb[0].mxu0 %v778
        %v1416 = vpop.f32.mrb[0].mxu0
        %v1417 = vadd.f32 %v1269, %v1416
        %v1418 = vpop.f32.mrb[0].mxu0
        %v1419 = vpop.f32.mrb[0].mxu0
        %v1420 = vadd.f32 %v1269, %v1419
        %v1421 = vpop.f32.mrb[0].mxu0
        %1422 = vmatprep.mubr.bf16.mxu0 %v781
        %1423 = vmatmul.mubr.bf16.gmra.mrb[0].mxu0 %v780
        %v1424 = vpop.f32.mrb[0].mxu0
        %v1425 = vadd.f32 %v1269, %v1424
        %v1426 = vpop.f32.mrb[0].mxu0
        %v1427 = vpop.f32.mrb[0].mxu0
        %v1428 = vadd.f32 %v1269, %v1427
        %v1429 = vpop.f32.mrb[0].mxu0
        %1430 = vdwg.mxu0
        %v1431 = vmax.f32 %v1305, 0.0
        %v1432 = vmax.f32 %v1308, 0.0
        %v1433 = vmax.f32 %v1313, 0.0
        %v1434 = vmax.f32 %v1316, 0.0
        %v1435 = vmax.f32 %v1321, 0.0
        %v1436 = vmax.f32 %v1324, 0.0
        %v1437 = vmax.f32 %v1329, 0.0
        %v1438 = vmax.f32 %v1332, 0.0
        %v1439 = vmax.f32 %v1337, 0.0
        %v1440 = vmax.f32 %v1340, 0.0
        %v1441 = vmax.f32 %v1345, 0.0
        %v1442 = vmax.f32 %v1348, 0.0
        %v1443 = vmax.f32 %v1353, 0.0
        %v1444 = vmax.f32 %v1356, 0.0
        %v1445 = vmax.f32 %v1361, 0.0
        %v1446 = vmax.f32 %v1364, 0.0
        %v1447 = vmax.f32 %v1369, 0.0
        %v1448 = vmax.f32 %v1372, 0.0
        %v1449 = vmax.f32 %v1377, 0.0
        %v1450 = vmax.f32 %v1380, 0.0
        %v1451 = vmax.f32 %v1385, 0.0
        %v1452 = vmax.f32 %v1388, 0.0
        %v1453 = vmax.f32 %v1393, 0.0
        %v1454 = vmax.f32 %v1396, 0.0
        %v1455 = vmax.f32 %v1401, 0.0
        %v1456 = vmax.f32 %v1404, 0.0
        %v1457 = vmax.f32 %v1409, 0.0
        %v1458 = vmax.f32 %v1412, 0.0
        %v1459 = vmax.f32 %v1417, 0.0
        %v1460 = vmax.f32 %v1420, 0.0
        %v1461 = vmax.f32 %v1425, 0.0
        %v1462 = vmax.f32 %v1428, 0.0
        %v1463 = vpack.c.bf16 %v1432, %v1431
        %v1464 = vpack.c.bf16 %v1434, %v1433
        %v1465 = vpack.c.bf16 %v1436, %v1435
        %v1466 = vpack.c.bf16 %v1438, %v1437
        %v1467 = vpack.c.bf16 %v1440, %v1439
        %v1468 = vpack.c.bf16 %v1442, %v1441
        %v1469 = vpack.c.bf16 %v1444, %v1443
        %v1470 = vpack.c.bf16 %v1446, %v1445
        %v1471 = vpack.c.bf16 %v1448, %v1447
        %v1472 = vpack.c.bf16 %v1450, %v1449
        %v1473 = vpack.c.bf16 %v1452, %v1451
        %v1474 = vpack.c.bf16 %v1454, %v1453
        %v1475 = vpack.c.bf16 %v1456, %v1455
        %v1476 = vpack.c.bf16 %v1458, %v1457
        %v1477 = vpack.c.bf16 %v1460, %v1459
        %v1478 = vpack.c.bf16 %v1462, %v1461
        %s1479 = scalar_lea.vmem [#allocation7], 128
        %v1480 = vld [vmem:[%s1479] sm:$0xf]
        %v1481 = vld [vmem:[%s1479 + $0x4] sm:$0xf]
        %v1482 = vld [vmem:[%s1479 + $0x8] sm:$0xf]
        %v1483 = vld [vmem:[%s1479 + $0xc] sm:$0xf]
        %v1484 = vld [vmem:[%s1479 + $0x10] sm:$0xf]
        %v1485 = vld [vmem:[%s1479 + $0x14] sm:$0xf]
        %v1486 = vld [vmem:[%s1479 + $0x18] sm:$0xf]
        %v1487 = vld [vmem:[%s1479 + $0x1c] sm:$0xf]
        %v1488 = vld [vmem:[%s1479 + $0x20] sm:$0xf]
        %v1489 = vld [vmem:[%s1479 + $0x24] sm:$0xf]
        %v1490 = vld [vmem:[%s1479 + $0x28] sm:$0xf]
        %v1491 = vld [vmem:[%s1479 + $0x2c] sm:$0xf]
        %v1492 = vld [vmem:[%s1479 + $0x30] sm:$0xf]
        %v1493 = vld [vmem:[%s1479 + $0x34] sm:$0xf]
        %v1494 = vld [vmem:[%s1479 + $0x38] sm:$0xf]
        %v1495 = vld [vmem:[%s1479 + $0x3c] sm:$0xf]
        %v1512 = vunpack.c.l.b16 %v1480
        %v1513 = vunpack.c.l.b16 %v1481
        %v1514 = vunpack.c.l.b16 %v1482
        %v1515 = vunpack.c.l.b16 %v1483
        %v1516 = vunpack.c.l.b16 %v1484
        %v1517 = vunpack.c.l.b16 %v1485
        %v1518 = vunpack.c.l.b16 %v1486
        %v1519 = vunpack.c.l.b16 %v1487
        %v1520 = vunpack.c.l.b16 %v1488
        %v1521 = vunpack.c.l.b16 %v1489
        %v1522 = vunpack.c.l.b16 %v1490
        %v1523 = vunpack.c.l.b16 %v1491
        %v1524 = vunpack.c.l.b16 %v1492
        %v1525 = vunpack.c.l.b16 %v1493
        %v1526 = vunpack.c.l.b16 %v1494
        %v1527 = vunpack.c.l.b16 %v1495
        %v1528 = vpack.c.b16 %v1513, %v1512
        %v1529 = vpack.c.b16 %v1515, %v1514
        %v1530 = vpack.c.b16 %v1517, %v1516
        %v1531 = vpack.c.b16 %v1519, %v1518
        %v1532 = vpack.c.b16 %v1521, %v1520
        %v1533 = vpack.c.b16 %v1523, %v1522
        %v1534 = vpack.c.b16 %v1525, %v1524
        %v1535 = vpack.c.b16 %v1527, %v1526
        %1544 = vmatprep.subr.bf16.mxu0 0
        %1545 = vmatpush1.bf16.msra.mxu0 %v1528
        %1546 = vmatprep.subr.bf16.mxu0 0
        %1547 = vmatpush1.bf16.msra.mxu0 %v1529
        %1548 = vmatprep.subr.bf16.mxu0 0
        %1549 = vmatpush1.bf16.msra.mxu0 %v1530
        %1550 = vmatprep.subr.bf16.mxu0 0
        %1551 = vmatpush1.bf16.msra.mxu0 %v1531
        %1552 = vmatprep.subr.bf16.mxu0 0
        %1553 = vmatpush1.bf16.msra.mxu0 %v1532
        %1554 = vmatprep.subr.bf16.mxu0 0
        %1555 = vmatpush1.bf16.msra.mxu0 %v1533
        %1556 = vmatprep.subr.bf16.mxu0 0
        %1557 = vmatpush1.bf16.msra.mxu0 %v1534
        %1558 = vmatprep.subr.bf16.mxu0 0
        %1559 = vmatpush1.bf16.msra.mxu0 %v1535
        %1560 = vmatprep.subr.bf16.mxu0 0
        %1561 = vmatpush1.bf16.msra.mxu0 0
        %1562 = vmatprep.subr.bf16.mxu0 0
        %1563 = vmatpush1.bf16.msra.mxu0 0
        %1564 = vmatprep.subr.bf16.mxu0 0
        %1565 = vmatpush1.bf16.msra.mxu0 0
        %1566 = vmatprep.subr.bf16.mxu0 0
        %1567 = vmatpush1.bf16.msra.mxu0 0
        %1568 = vmatprep.subr.bf16.mxu0 0
        %1569 = vmatpush1.bf16.msra.mxu0 0
        %1570 = vmatprep.subr.bf16.mxu0 0
        %1571 = vmatpush1.bf16.msra.mxu0 0
        %1572 = vmatprep.subr.bf16.mxu0 0
        %1573 = vmatpush1.bf16.msra.mxu0 0
        %1574 = vmatprep.subr.bf16.mxu0 0
        %1575 = vmatpush1.bf16.msra.mxu0 0
        %1576 = vmatprep.mubr.bf16.mxu0 0
        %1577 = vmatmul.mubr.bf16.gmra.mrb[0].mxu0 %v1463
        %v1578 = vpop.f32.mrb[0].mxu0
        %v1579 = vadd.f32 0.0, %v1578
        %v1580 = vpop.f32.mrb[0].mxu0
        %v1581 = vpop.f32.mrb[0].mxu0
        %v1582 = vadd.f32 0.0, %v1581
        %v1583 = vpop.f32.mrb[0].mxu0
        %1584 = vmatprep.mubr.bf16.mxu0 0
        %1585 = vmatmul.mubr.bf16.gmra.mrb[0].mxu0 %v1464
        %v1586 = vpop.f32.mrb[0].mxu0
        %v1587 = vadd.f32 0.0, %v1586
        %v1588 = vpop.f32.mrb[0].mxu0
        %v1589 = vpop.f32.mrb[0].mxu0
        %v1590 = vadd.f32 0.0, %v1589
        %v1591 = vpop.f32.mrb[0].mxu0
        %1592 = vmatprep.mubr.bf16.mxu0 0
        %1593 = vmatmul.mubr.bf16.gmra.mrb[0].mxu0 %v1465
        %v1594 = vpop.f32.mrb[0].mxu0
        %v1595 = vadd.f32 0.0, %v1594
        %v1596 = vpop.f32.mrb[0].mxu0
        %v1597 = vpop.f32.mrb[0].mxu0
        %v1598 = vadd.f32 0.0, %v1597
        %v1599 = vpop.f32.mrb[0].mxu0
        %1600 = vmatprep.mubr.bf16.mxu0 0
        %1601 = vmatmul.mubr.bf16.gmra.mrb[0].mxu0 %v1466
        %v1602 = vpop.f32.mrb[0].mxu0
        %v1603 = vadd.f32 0.0, %v1602
        %v1604 = vpop.f32.mrb[0].mxu0
        %v1605 = vpop.f32.mrb[0].mxu0
        %v1606 = vadd.f32 0.0, %v1605
        %v1607 = vpop.f32.mrb[0].mxu0
        %1608 = vmatprep.mubr.bf16.mxu0 0
        %1609 = vmatmul.mubr.bf16.gmra.mrb[0].mxu0 %v1467
        %v1610 = vpop.f32.mrb[0].mxu0
        %v1611 = vadd.f32 0.0, %v1610
        %v1612 = vpop.f32.mrb[0].mxu0
        %v1613 = vpop.f32.mrb[0].mxu0
        %v1614 = vadd.f32 0.0, %v1613
        %v1615 = vpop.f32.mrb[0].mxu0
        %1616 = vmatprep.mubr.bf16.mxu0 0
        %1617 = vmatmul.mubr.bf16.gmra.mrb[0].mxu0 %v1468
        %v1618 = vpop.f32.mrb[0].mxu0
        %v1619 = vadd.f32 0.0, %v1618
        %v1620 = vpop.f32.mrb[0].mxu0
        %v1621 = vpop.f32.mrb[0].mxu0
        %v1622 = vadd.f32 0.0, %v1621
        %v1623 = vpop.f32.mrb[0].mxu0
        %1624 = vmatprep.mubr.bf16.mxu0 0
        %1625 = vmatmul.mubr.bf16.gmra.mrb[0].mxu0 %v1469
        %v1626 = vpop.f32.mrb[0].mxu0
        %v1627 = vadd.f32 0.0, %v1626
        %v1628 = vpop.f32.mrb[0].mxu0
        %v1629 = vpop.f32.mrb[0].mxu0
        %v1630 = vadd.f32 0.0, %v1629
        %v1631 = vpop.f32.mrb[0].mxu0
        %1632 = vmatprep.mubr.bf16.mxu0 0
        %1633 = vmatmul.mubr.bf16.gmra.mrb[0].mxu0 %v1470
        %v1634 = vpop.f32.mrb[0].mxu0
        %v1635 = vadd.f32 0.0, %v1634
        %v1636 = vpop.f32.mrb[0].mxu0
        %v1637 = vpop.f32.mrb[0].mxu0
        %v1638 = vadd.f32 0.0, %v1637
        %v1639 = vpop.f32.mrb[0].mxu0
        %1640 = vmatprep.mubr.bf16.mxu0 0
        %1641 = vmatmul.mubr.bf16.gmra.mrb[0].mxu0 %v1471
        %v1642 = vpop.f32.mrb[0].mxu0
        %v1643 = vadd.f32 0.0, %v1642
        %v1644 = vpop.f32.mrb[0].mxu0
        %v1645 = vpop.f32.mrb[0].mxu0
        %v1646 = vadd.f32 0.0, %v1645
        %v1647 = vpop.f32.mrb[0].mxu0
        %1648 = vmatprep.mubr.bf16.mxu0 0
        %1649 = vmatmul.mubr.bf16.gmra.mrb[0].mxu0 %v1472
        %v1650 = vpop.f32.mrb[0].mxu0
        %v1651 = vadd.f32 0.0, %v1650
        %v1652 = vpop.f32.mrb[0].mxu0
        %v1653 = vpop.f32.mrb[0].mxu0
        %v1654 = vadd.f32 0.0, %v1653
        %v1655 = vpop.f32.mrb[0].mxu0
        %1656 = vmatprep.mubr.bf16.mxu0 0
        %1657 = vmatmul.mubr.bf16.gmra.mrb[0].mxu0 %v1473
        %v1658 = vpop.f32.mrb[0].mxu0
        %v1659 = vadd.f32 0.0, %v1658
        %v1660 = vpop.f32.mrb[0].mxu0
        %v1661 = vpop.f32.mrb[0].mxu0
        %v1662 = vadd.f32 0.0, %v1661
        %v1663 = vpop.f32.mrb[0].mxu0
        %1664 = vmatprep.mubr.bf16.mxu0 0
        %1665 = vmatmul.mubr.bf16.gmra.mrb[0].mxu0 %v1474
        %v1666 = vpop.f32.mrb[0].mxu0
        %v1667 = vadd.f32 0.0, %v1666
        %v1668 = vpop.f32.mrb[0].mxu0
        %v1669 = vpop.f32.mrb[0].mxu0
        %v1670 = vadd.f32 0.0, %v1669
        %v1671 = vpop.f32.mrb[0].mxu0
        %1672 = vmatprep.mubr.bf16.mxu0 0
        %1673 = vmatmul.mubr.bf16.gmra.mrb[0].mxu0 %v1475
        %v1674 = vpop.f32.mrb[0].mxu0
        %v1675 = vadd.f32 0.0, %v1674
        %v1676 = vpop.f32.mrb[0].mxu0
        %v1677 = vpop.f32.mrb[0].mxu0
        %v1678 = vadd.f32 0.0, %v1677
        %v1679 = vpop.f32.mrb[0].mxu0
        %1680 = vmatprep.mubr.bf16.mxu0 0
        %1681 = vmatmul.mubr.bf16.gmra.mrb[0].mxu0 %v1476
        %v1682 = vpop.f32.mrb[0].mxu0
        %v1683 = vadd.f32 0.0, %v1682
        %v1684 = vpop.f32.mrb[0].mxu0
        %v1685 = vpop.f32.mrb[0].mxu0
        %v1686 = vadd.f32 0.0, %v1685
        %v1687 = vpop.f32.mrb[0].mxu0
        %1688 = vmatprep.mubr.bf16.mxu0 0
        %1689 = vmatmul.mubr.bf16.gmra.mrb[0].mxu0 %v1477
        %v1690 = vpop.f32.mrb[0].mxu0
        %v1691 = vadd.f32 0.0, %v1690
        %v1692 = vpop.f32.mrb[0].mxu0
        %v1693 = vpop.f32.mrb[0].mxu0
        %v1694 = vadd.f32 0.0, %v1693
        %v1695 = vpop.f32.mrb[0].mxu0
        %1696 = vmatprep.mubr.bf16.mxu0 0
        %1697 = vmatmul.mubr.bf16.gmra.mrb[0].mxu0 %v1478
        %v1698 = vpop.f32.mrb[0].mxu0
        %v1699 = vadd.f32 0.0, %v1698
        %v1700 = vpop.f32.mrb[0].mxu0
        %v1701 = vpop.f32.mrb[0].mxu0
        %v1702 = vadd.f32 0.0, %v1701
        %v1703 = vpop.f32.mrb[0].mxu0
        %1704 = vdwg.mxu0
        %v1705 = vpack.c.bf16 %v1582, %v1579
        %v1706 = vpack.c.bf16 %v1590, %v1587
        %v1707 = vpack.c.bf16 %v1598, %v1595
        %v1708 = vpack.c.bf16 %v1606, %v1603
        %v1709 = vpack.c.bf16 %v1614, %v1611
        %v1710 = vpack.c.bf16 %v1622, %v1619
        %v1711 = vpack.c.bf16 %v1630, %v1627
        %v1712 = vpack.c.bf16 %v1638, %v1635
        %v1713 = vpack.c.bf16 %v1646, %v1643
        %v1714 = vpack.c.bf16 %v1654, %v1651
        %v1715 = vpack.c.bf16 %v1662, %v1659
        %v1716 = vpack.c.bf16 %v1670, %v1667
        %v1717 = vpack.c.bf16 %v1678, %v1675
        %v1718 = vpack.c.bf16 %v1686, %v1683
        %v1719 = vpack.c.bf16 %v1694, %v1691
        %v1720 = vpack.c.bf16 %v1702, %v1699
        %v1721 = vld [vmem:[%s3 + $0x2] sm:$0x1]
        %v1722 = vlaneseq
        %v1723 = vshrl.u32 %v1722, 7
        %v1724 = vsub.s32 0, %v1723
        %v1725 = vrot.slane %v1721, %v1724
        %1726 = vmatprep.subr.bf16.mxu0 0
        %1727 = vmatpush1.bf16.msra.mxu0 %v1705
        %1728 = vmatprep.subr.bf16.mxu0 0
        %1729 = vmatpush1.bf16.msra.mxu0 %v1706
        %1730 = vmatprep.subr.bf16.mxu0 0
        %1731 = vmatpush1.bf16.msra.mxu0 %v1707
        %1732 = vmatprep.subr.bf16.mxu0 0
        %1733 = vmatpush1.bf16.msra.mxu0 %v1708
        %1734 = vmatprep.subr.bf16.mxu0 0
        %1735 = vmatpush1.bf16.msra.mxu0 %v1709
        %1736 = vmatprep.subr.bf16.mxu0 0
        %1737 = vmatpush1.bf16.msra.mxu0 %v1710
        %1738 = vmatprep.subr.bf16.mxu0 0
        %1739 = vmatpush1.bf16.msra.mxu0 %v1711
        %1740 = vmatprep.subr.bf16.mxu0 0
        %1741 = vmatpush1.bf16.msra.mxu0 %v1712
        %1742 = vmatprep.subr.bf16.mxu0 0
        %1743 = vmatpush1.bf16.msra.mxu0 %v1713
        %1744 = vmatprep.subr.bf16.mxu0 0
        %1745 = vmatpush1.bf16.msra.mxu0 %v1714
        %1746 = vmatprep.subr.bf16.mxu0 0
        %1747 = vmatpush1.bf16.msra.mxu0 %v1715
        %1748 = vmatprep.subr.bf16.mxu0 0
        %1749 = vmatpush1.bf16.msra.mxu0 %v1716
        %1750 = vmatprep.subr.bf16.mxu0 0
        %1751 = vmatpush1.bf16.msra.mxu0 %v1717
        %1752 = vmatprep.subr.bf16.mxu0 0
        %1753 = vmatpush1.bf16.msra.mxu0 %v1718
        %1754 = vmatprep.subr.bf16.mxu0 0
        %1755 = vmatpush1.bf16.msra.mxu0 %v1719
        %1756 = vmatprep.subr.bf16.mxu0 0
        %1757 = vmatpush1.bf16.msra.mxu0 %v1720
        %1758 = vmatprep.mubr.bf16.mxu0 %v751
        %1759 = vmatmul.mubr.bf16.gmra.mrb[0].mxu0 %v750
        %v1760 = vpop.f32.mrb[0].mxu0
        %v1761 = vadd.f32 %v1725, %v1760
        %v1762 = vpop.f32.mrb[0].mxu0
        %v1763 = vpop.f32.mrb[0].mxu0
        %v1764 = vadd.f32 %v1725, %v1763
        %v1765 = vpop.f32.mrb[0].mxu0
        %1766 = vmatprep.mubr.bf16.mxu0 %v753
        %1767 = vmatmul.mubr.bf16.gmra.mrb[0].mxu0 %v752
        %v1768 = vpop.f32.mrb[0].mxu0
        %v1769 = vadd.f32 %v1725, %v1768
        %v1770 = vpop.f32.mrb[0].mxu0
        %v1771 = vpop.f32.mrb[0].mxu0
        %v1772 = vadd.f32 %v1725, %v1771
        %v1773 = vpop.f32.mrb[0].mxu0
        %1774 = vmatprep.mubr.bf16.mxu0 %v755
        %1775 = vmatmul.mubr.bf16.gmra.mrb[0].mxu0 %v754
        %v1776 = vpop.f32.mrb[0].mxu0
        %v1777 = vadd.f32 %v1725, %v1776
        %v1778 = vpop.f32.mrb[0].mxu0
        %v1779 = vpop.f32.mrb[0].mxu0
        %v1780 = vadd.f32 %v1725, %v1779
        %v1781 = vpop.f32.mrb[0].mxu0
        %1782 = vmatprep.mubr.bf16.mxu0 %v757
        %1783 = vmatmul.mubr.bf16.gmra.mrb[0].mxu0 %v756
        %v1784 = vpop.f32.mrb[0].mxu0
        %v1785 = vadd.f32 %v1725, %v1784
        %v1786 = vpop.f32.mrb[0].mxu0
        %v1787 = vpop.f32.mrb[0].mxu0
        %v1788 = vadd.f32 %v1725, %v1787
        %v1789 = vpop.f32.mrb[0].mxu0
        %1790 = vmatprep.mubr.bf16.mxu0 %v759
        %1791 = vmatmul.mubr.bf16.gmra.mrb[0].mxu0 %v758
        %v1792 = vpop.f32.mrb[0].mxu0
        %v1793 = vadd.f32 %v1725, %v1792
        %v1794 = vpop.f32.mrb[0].mxu0
        %v1795 = vpop.f32.mrb[0].mxu0
        %v1796 = vadd.f32 %v1725, %v1795
        %v1797 = vpop.f32.mrb[0].mxu0
        %1798 = vmatprep.mubr.bf16.mxu0 %v761
        %1799 = vmatmul.mubr.bf16.gmra.mrb[0].mxu0 %v760
        %v1800 = vpop.f32.mrb[0].mxu0
        %v1801 = vadd.f32 %v1725, %v1800
        %v1802 = vpop.f32.mrb[0].mxu0
        %v1803 = vpop.f32.mrb[0].mxu0
        %v1804 = vadd.f32 %v1725, %v1803
        %v1805 = vpop.f32.mrb[0].mxu0
        %1806 = vmatprep.mubr.bf16.mxu0 %v763
        %1807 = vmatmul.mubr.bf16.gmra.mrb[0].mxu0 %v762
        %v1808 = vpop.f32.mrb[0].mxu0
        %v1809 = vadd.f32 %v1725, %v1808
        %v1810 = vpop.f32.mrb[0].mxu0
        %v1811 = vpop.f32.mrb[0].mxu0
        %v1812 = vadd.f32 %v1725, %v1811
        %v1813 = vpop.f32.mrb[0].mxu0
        %1814 = vmatprep.mubr.bf16.mxu0 %v765
        %1815 = vmatmul.mubr.bf16.gmra.mrb[0].mxu0 %v764
        %v1816 = vpop.f32.mrb[0].mxu0
        %v1817 = vadd.f32 %v1725, %v1816
        %v1818 = vpop.f32.mrb[0].mxu0
        %v1819 = vpop.f32.mrb[0].mxu0
        %v1820 = vadd.f32 %v1725, %v1819
        %v1821 = vpop.f32.mrb[0].mxu0
        %1822 = vmatprep.mubr.bf16.mxu0 %v767
        %1823 = vmatmul.mubr.bf16.gmra.mrb[0].mxu0 %v766
        %v1824 = vpop.f32.mrb[0].mxu0
        %v1825 = vadd.f32 %v1725, %v1824
        %v1826 = vpop.f32.mrb[0].mxu0
        %v1827 = vpop.f32.mrb[0].mxu0
        %v1828 = vadd.f32 %v1725, %v1827
        %v1829 = vpop.f32.mrb[0].mxu0
        %1830 = vmatprep.mubr.bf16.mxu0 %v769
        %1831 = vmatmul.mubr.bf16.gmra.mrb[0].mxu0 %v768
        %v1832 = vpop.f32.mrb[0].mxu0
        %v1833 = vadd.f32 %v1725, %v1832
        %v1834 = vpop.f32.mrb[0].mxu0
        %v1835 = vpop.f32.mrb[0].mxu0
        %v1836 = vadd.f32 %v1725, %v1835
        %v1837 = vpop.f32.mrb[0].mxu0
        %1838 = vmatprep.mubr.bf16.mxu0 %v771
        %1839 = vmatmul.mubr.bf16.gmra.mrb[0].mxu0 %v770
        %v1840 = vpop.f32.mrb[0].mxu0
        %v1841 = vadd.f32 %v1725, %v1840
        %v1842 = vpop.f32.mrb[0].mxu0
        %v1843 = vpop.f32.mrb[0].mxu0
        %v1844 = vadd.f32 %v1725, %v1843
        %v1845 = vpop.f32.mrb[0].mxu0
        %1846 = vmatprep.mubr.bf16.mxu0 %v773
        %1847 = vmatmul.mubr.bf16.gmra.mrb[0].mxu0 %v772
        %v1848 = vpop.f32.mrb[0].mxu0
        %v1849 = vadd.f32 %v1725, %v1848
        %v1850 = vpop.f32.mrb[0].mxu0
        %v1851 = vpop.f32.mrb[0].mxu0
        %v1852 = vadd.f32 %v1725, %v1851
        %v1853 = vpop.f32.mrb[0].mxu0
        %1854 = vmatprep.mubr.bf16.mxu0 %v775
        %1855 = vmatmul.mubr.bf16.gmra.mrb[0].mxu0 %v774
        %v1856 = vpop.f32.mrb[0].mxu0
        %v1857 = vadd.f32 %v1725, %v1856
        %v1858 = vpop.f32.mrb[0].mxu0
        %v1859 = vpop.f32.mrb[0].mxu0
        %v1860 = vadd.f32 %v1725, %v1859
        %v1861 = vpop.f32.mrb[0].mxu0
        %1862 = vmatprep.mubr.bf16.mxu0 %v777
        %1863 = vmatmul.mubr.bf16.gmra.mrb[0].mxu0 %v776
        %v1864 = vpop.f32.mrb[0].mxu0
        %v1865 = vadd.f32 %v1725, %v1864
        %v1866 = vpop.f32.mrb[0].mxu0
        %v1867 = vpop.f32.mrb[0].mxu0
        %v1868 = vadd.f32 %v1725, %v1867
        %v1869 = vpop.f32.mrb[0].mxu0
        %1870 = vmatprep.mubr.bf16.mxu0 %v779
        %1871 = vmatmul.mubr.bf16.gmra.mrb[0].mxu0 %v778
        %v1872 = vpop.f32.mrb[0].mxu0
        %v1873 = vadd.f32 %v1725, %v1872
        %v1874 = vpop.f32.mrb[0].mxu0
        %v1875 = vpop.f32.mrb[0].mxu0
        %v1876 = vadd.f32 %v1725, %v1875
        %v1877 = vpop.f32.mrb[0].mxu0
        %1878 = vmatprep.mubr.bf16.mxu0 %v781
        %1879 = vmatmul.mubr.bf16.gmra.mrb[0].mxu0 %v780
        %v1880 = vpop.f32.mrb[0].mxu0
        %v1881 = vadd.f32 %v1725, %v1880
        %v1882 = vpop.f32.mrb[0].mxu0
        %v1883 = vpop.f32.mrb[0].mxu0
        %v1884 = vadd.f32 %v1725, %v1883
        %v1885 = vpop.f32.mrb[0].mxu0
        %1886 = vdwg.mxu0
        %v1887 = vmax.f32 %v1761, 0.0
        %v1888 = vmax.f32 %v1764, 0.0
        %v1889 = vmax.f32 %v1769, 0.0
        %v1890 = vmax.f32 %v1772, 0.0
        %v1891 = vmax.f32 %v1777, 0.0
        %v1892 = vmax.f32 %v1780, 0.0
        %v1893 = vmax.f32 %v1785, 0.0
        %v1894 = vmax.f32 %v1788, 0.0
        %v1895 = vmax.f32 %v1793, 0.0
        %v1896 = vmax.f32 %v1796, 0.0
        %v1897 = vmax.f32 %v1801, 0.0
        %v1898 = vmax.f32 %v1804, 0.0
        %v1899 = vmax.f32 %v1809, 0.0
        %v1900 = vmax.f32 %v1812, 0.0
        %v1901 = vmax.f32 %v1817, 0.0
        %v1902 = vmax.f32 %v1820, 0.0
        %v1903 = vmax.f32 %v1825, 0.0
        %v1904 = vmax.f32 %v1828, 0.0
        %v1905 = vmax.f32 %v1833, 0.0
        %v1906 = vmax.f32 %v1836, 0.0
        %v1907 = vmax.f32 %v1841, 0.0
        %v1908 = vmax.f32 %v1844, 0.0
        %v1909 = vmax.f32 %v1849, 0.0
        %v1910 = vmax.f32 %v1852, 0.0
        %v1911 = vmax.f32 %v1857, 0.0
        %v1912 = vmax.f32 %v1860, 0.0
        %v1913 = vmax.f32 %v1865, 0.0
        %v1914 = vmax.f32 %v1868, 0.0
        %v1915 = vmax.f32 %v1873, 0.0
        %v1916 = vmax.f32 %v1876, 0.0
        %v1917 = vmax.f32 %v1881, 0.0
        %v1918 = vmax.f32 %v1884, 0.0
        %v1919 = vpack.c.bf16 %v1888, %v1887
        %v1920 = vpack.c.bf16 %v1890, %v1889
        %v1921 = vpack.c.bf16 %v1892, %v1891
        %v1922 = vpack.c.bf16 %v1894, %v1893
        %v1923 = vpack.c.bf16 %v1896, %v1895
        %v1924 = vpack.c.bf16 %v1898, %v1897
        %v1925 = vpack.c.bf16 %v1900, %v1899
        %v1926 = vpack.c.bf16 %v1902, %v1901
        %v1927 = vpack.c.bf16 %v1904, %v1903
        %v1928 = vpack.c.bf16 %v1906, %v1905
        %v1929 = vpack.c.bf16 %v1908, %v1907
        %v1930 = vpack.c.bf16 %v1910, %v1909
        %v1931 = vpack.c.bf16 %v1912, %v1911
        %v1932 = vpack.c.bf16 %v1914, %v1913
        %v1933 = vpack.c.bf16 %v1916, %v1915
        %v1934 = vpack.c.bf16 %v1918, %v1917
        %s1935 = scalar_lea.vmem [#allocation7], 192
        %v1936 = vld [vmem:[%s1935] sm:$0xf]
        %v1937 = vld [vmem:[%s1935 + $0x4] sm:$0xf]
        %v1938 = vld [vmem:[%s1935 + $0x8] sm:$0xf]
        %v1939 = vld [vmem:[%s1935 + $0xc] sm:$0xf]
        %v1940 = vld [vmem:[%s1935 + $0x10] sm:$0xf]
        %v1941 = vld [vmem:[%s1935 + $0x14] sm:$0xf]
        %v1942 = vld [vmem:[%s1935 + $0x18] sm:$0xf]
        %v1943 = vld [vmem:[%s1935 + $0x1c] sm:$0xf]
        %v1944 = vld [vmem:[%s1935 + $0x20] sm:$0xf]
        %v1945 = vld [vmem:[%s1935 + $0x24] sm:$0xf]
        %v1946 = vld [vmem:[%s1935 + $0x28] sm:$0xf]
        %v1947 = vld [vmem:[%s1935 + $0x2c] sm:$0xf]
        %v1948 = vld [vmem:[%s1935 + $0x30] sm:$0xf]
        %v1949 = vld [vmem:[%s1935 + $0x34] sm:$0xf]
        %v1950 = vld [vmem:[%s1935 + $0x38] sm:$0xf]
        %v1951 = vld [vmem:[%s1935 + $0x3c] sm:$0xf]
        %v1952 = vld [vmem:[%s3 + $0x3] sm:$0x1]
        %v1953 = vlaneseq
        %v1954 = vshrl.u32 %v1953, 7
        %v1955 = vsub.s32 0, %v1954
        %v1956 = vrot.slane %v1952, %v1955
        %v1973 = vunpack.c.l.b16 %v1936
        %v1974 = vunpack.c.l.b16 %v1937
        %v1975 = vunpack.c.l.b16 %v1938
        %v1976 = vunpack.c.l.b16 %v1939
        %v1977 = vunpack.c.l.b16 %v1940
        %v1978 = vunpack.c.l.b16 %v1941
        %v1979 = vunpack.c.l.b16 %v1942
        %v1980 = vunpack.c.l.b16 %v1943
        %v1981 = vunpack.c.l.b16 %v1944
        %v1982 = vunpack.c.l.b16 %v1945
        %v1983 = vunpack.c.l.b16 %v1946
        %v1984 = vunpack.c.l.b16 %v1947
        %v1985 = vunpack.c.l.b16 %v1948
        %v1986 = vunpack.c.l.b16 %v1949
        %v1987 = vunpack.c.l.b16 %v1950
        %v1988 = vunpack.c.l.b16 %v1951
        %v1989 = vpack.c.b16 %v1974, %v1973
        %v1990 = vpack.c.b16 %v1976, %v1975
        %v1991 = vpack.c.b16 %v1978, %v1977
        %v1992 = vpack.c.b16 %v1980, %v1979
        %v1993 = vpack.c.b16 %v1982, %v1981
        %v1994 = vpack.c.b16 %v1984, %v1983
        %v1995 = vpack.c.b16 %v1986, %v1985
        %v1996 = vpack.c.b16 %v1988, %v1987
        %2005 = vmatprep.subr.bf16.mxu0 0
        %2006 = vmatpush1.bf16.msra.mxu0 %v1989
        %2007 = vmatprep.subr.bf16.mxu0 0
        %2008 = vmatpush1.bf16.msra.mxu0 %v1990
        %2009 = vmatprep.subr.bf16.mxu0 0
        %2010 = vmatpush1.bf16.msra.mxu0 %v1991
        %2011 = vmatprep.subr.bf16.mxu0 0
        %2012 = vmatpush1.bf16.msra.mxu0 %v1992
        %2013 = vmatprep.subr.bf16.mxu0 0
        %2014 = vmatpush1.bf16.msra.mxu0 %v1993
        %2015 = vmatprep.subr.bf16.mxu0 0
        %2016 = vmatpush1.bf16.msra.mxu0 %v1994
        %2017 = vmatprep.subr.bf16.mxu0 0
        %2018 = vmatpush1.bf16.msra.mxu0 %v1995
        %2019 = vmatprep.subr.bf16.mxu0 0
        %2020 = vmatpush1.bf16.msra.mxu0 %v1996
        %2021 = vmatprep.subr.bf16.mxu0 0
        %2022 = vmatpush1.bf16.msra.mxu0 0
        %2023 = vmatprep.subr.bf16.mxu0 0
        %2024 = vmatpush1.bf16.msra.mxu0 0
        %2025 = vmatprep.subr.bf16.mxu0 0
        %2026 = vmatpush1.bf16.msra.mxu0 0
        %2027 = vmatprep.subr.bf16.mxu0 0
        %2028 = vmatpush1.bf16.msra.mxu0 0
        %2029 = vmatprep.subr.bf16.mxu0 0
        %2030 = vmatpush1.bf16.msra.mxu0 0
        %2031 = vmatprep.subr.bf16.mxu0 0
        %2032 = vmatpush1.bf16.msra.mxu0 0
        %2033 = vmatprep.subr.bf16.mxu0 0
        %2034 = vmatpush1.bf16.msra.mxu0 0
        %2035 = vmatprep.subr.bf16.mxu0 0
        %2036 = vmatpush1.bf16.msra.mxu0 0
        %2037 = vmatprep.mubr.bf16.mxu0 0
        %2038 = vmatmul.mubr.bf16.gmra.mrb[0].mxu0 %v1919
        %v2039 = vpop.f32.mrb[0].mxu0
        %v2040 = vadd.f32 %v1956, %v2039
        %v2041 = vpop.f32.mrb[0].mxu0
        %v2042 = vpop.f32.mrb[0].mxu0
        %v2043 = vadd.f32 %v1956, %v2042
        %v2044 = vpop.f32.mrb[0].mxu0
        %2045 = vmatprep.mubr.bf16.mxu0 0
        %2046 = vmatmul.mubr.bf16.gmra.mrb[0].mxu0 %v1920
        %v2047 = vpop.f32.mrb[0].mxu0
        %v2048 = vadd.f32 %v1956, %v2047
        %v2049 = vpop.f32.mrb[0].mxu0
        %v2050 = vpop.f32.mrb[0].mxu0
        %v2051 = vadd.f32 %v1956, %v2050
        %v2052 = vpop.f32.mrb[0].mxu0
        %2053 = vmatprep.mubr.bf16.mxu0 0
        %2054 = vmatmul.mubr.bf16.gmra.mrb[0].mxu0 %v1921
        %v2055 = vpop.f32.mrb[0].mxu0
        %v2056 = vadd.f32 %v1956, %v2055
        %v2057 = vpop.f32.mrb[0].mxu0
        %v2058 = vpop.f32.mrb[0].mxu0
        %v2059 = vadd.f32 %v1956, %v2058
        %v2060 = vpop.f32.mrb[0].mxu0
        %2061 = vmatprep.mubr.bf16.mxu0 0
        %2062 = vmatmul.mubr.bf16.gmra.mrb[0].mxu0 %v1922
        %v2063 = vpop.f32.mrb[0].mxu0
        %v2064 = vadd.f32 %v1956, %v2063
        %v2065 = vpop.f32.mrb[0].mxu0
        %v2066 = vpop.f32.mrb[0].mxu0
        %v2067 = vadd.f32 %v1956, %v2066
        %v2068 = vpop.f32.mrb[0].mxu0
        %2069 = vmatprep.mubr.bf16.mxu0 0
        %2070 = vmatmul.mubr.bf16.gmra.mrb[0].mxu0 %v1923
        %v2071 = vpop.f32.mrb[0].mxu0
        %v2072 = vadd.f32 %v1956, %v2071
        %v2073 = vpop.f32.mrb[0].mxu0
        %v2074 = vpop.f32.mrb[0].mxu0
        %v2075 = vadd.f32 %v1956, %v2074
        %v2076 = vpop.f32.mrb[0].mxu0
        %2077 = vmatprep.mubr.bf16.mxu0 0
        %2078 = vmatmul.mubr.bf16.gmra.mrb[0].mxu0 %v1924
        %v2079 = vpop.f32.mrb[0].mxu0
        %v2080 = vadd.f32 %v1956, %v2079
        %v2081 = vpop.f32.mrb[0].mxu0
        %v2082 = vpop.f32.mrb[0].mxu0
        %v2083 = vadd.f32 %v1956, %v2082
        %v2084 = vpop.f32.mrb[0].mxu0
        %2085 = vmatprep.mubr.bf16.mxu0 0
        %2086 = vmatmul.mubr.bf16.gmra.mrb[0].mxu0 %v1925
        %v2087 = vpop.f32.mrb[0].mxu0
        %v2088 = vadd.f32 %v1956, %v2087
        %v2089 = vpop.f32.mrb[0].mxu0
        %v2090 = vpop.f32.mrb[0].mxu0
        %v2091 = vadd.f32 %v1956, %v2090
        %v2092 = vpop.f32.mrb[0].mxu0
        %2093 = vmatprep.mubr.bf16.mxu0 0
        %2094 = vmatmul.mubr.bf16.gmra.mrb[0].mxu0 %v1926
        %v2095 = vpop.f32.mrb[0].mxu0
        %v2096 = vadd.f32 %v1956, %v2095
        %v2097 = vpop.f32.mrb[0].mxu0
        %v2098 = vpop.f32.mrb[0].mxu0
        %v2099 = vadd.f32 %v1956, %v2098
        %v2100 = vpop.f32.mrb[0].mxu0
        %2101 = vmatprep.mubr.bf16.mxu0 0
        %2102 = vmatmul.mubr.bf16.gmra.mrb[0].mxu0 %v1927
        %v2103 = vpop.f32.mrb[0].mxu0
        %v2104 = vadd.f32 %v1956, %v2103
        %v2105 = vpop.f32.mrb[0].mxu0
        %v2106 = vpop.f32.mrb[0].mxu0
        %v2107 = vadd.f32 %v1956, %v2106
        %v2108 = vpop.f32.mrb[0].mxu0
        %2109 = vmatprep.mubr.bf16.mxu0 0
        %2110 = vmatmul.mubr.bf16.gmra.mrb[0].mxu0 %v1928
        %v2111 = vpop.f32.mrb[0].mxu0
        %v2112 = vadd.f32 %v1956, %v2111
        %v2113 = vpop.f32.mrb[0].mxu0
        %v2114 = vpop.f32.mrb[0].mxu0
        %v2115 = vadd.f32 %v1956, %v2114
        %v2116 = vpop.f32.mrb[0].mxu0
        %2117 = vmatprep.mubr.bf16.mxu0 0
        %2118 = vmatmul.mubr.bf16.gmra.mrb[0].mxu0 %v1929
        %v2119 = vpop.f32.mrb[0].mxu0
        %v2120 = vadd.f32 %v1956, %v2119
        %v2121 = vpop.f32.mrb[0].mxu0
        %v2122 = vpop.f32.mrb[0].mxu0
        %v2123 = vadd.f32 %v1956, %v2122
        %v2124 = vpop.f32.mrb[0].mxu0
        %2125 = vmatprep.mubr.bf16.mxu0 0
        %2126 = vmatmul.mubr.bf16.gmra.mrb[0].mxu0 %v1930
        %v2127 = vpop.f32.mrb[0].mxu0
        %v2128 = vadd.f32 %v1956, %v2127
        %v2129 = vpop.f32.mrb[0].mxu0
        %v2130 = vpop.f32.mrb[0].mxu0
        %v2131 = vadd.f32 %v1956, %v2130
        %v2132 = vpop.f32.mrb[0].mxu0
        %2133 = vmatprep.mubr.bf16.mxu0 0
        %2134 = vmatmul.mubr.bf16.gmra.mrb[0].mxu0 %v1931
        %v2135 = vpop.f32.mrb[0].mxu0
        %v2136 = vadd.f32 %v1956, %v2135
        %v2137 = vpop.f32.mrb[0].mxu0
        %v2138 = vpop.f32.mrb[0].mxu0
        %v2139 = vadd.f32 %v1956, %v2138
        %v2140 = vpop.f32.mrb[0].mxu0
        %2141 = vmatprep.mubr.bf16.mxu0 0
        %2142 = vmatmul.mubr.bf16.gmra.mrb[0].mxu0 %v1932
        %v2143 = vpop.f32.mrb[0].mxu0
        %v2144 = vadd.f32 %v1956, %v2143
        %v2145 = vpop.f32.mrb[0].mxu0
        %v2146 = vpop.f32.mrb[0].mxu0
        %v2147 = vadd.f32 %v1956, %v2146
        %v2148 = vpop.f32.mrb[0].mxu0
        %2149 = vmatprep.mubr.bf16.mxu0 0
        %2150 = vmatmul.mubr.bf16.gmra.mrb[0].mxu0 %v1933
        %v2151 = vpop.f32.mrb[0].mxu0
        %v2152 = vadd.f32 %v1956, %v2151
        %v2153 = vpop.f32.mrb[0].mxu0
        %v2154 = vpop.f32.mrb[0].mxu0
        %v2155 = vadd.f32 %v1956, %v2154
        %v2156 = vpop.f32.mrb[0].mxu0
        %2157 = vmatprep.mubr.bf16.mxu0 0
        %2158 = vmatmul.mubr.bf16.gmra.mrb[0].mxu0 %v1934
        %v2159 = vpop.f32.mrb[0].mxu0
        %v2160 = vadd.f32 %v1956, %v2159
        %v2161 = vpop.f32.mrb[0].mxu0
        %v2162 = vpop.f32.mrb[0].mxu0
        %v2163 = vadd.f32 %v1956, %v2162
        %v2164 = vpop.f32.mrb[0].mxu0
        %2165 = vdwg.mxu0
        %2166 = vst [vmem:[%s244] sm:$0xff] %v2040
        %2167 = vst [vmem:[%s244 + $0x8] sm:$0xff] %v2043
        %2168 = vst [vmem:[%s244 + $0x10] sm:$0xff] %v2048
        %2169 = vst [vmem:[%s244 + $0x18] sm:$0xff] %v2051
        %2170 = vst [vmem:[%s244 + $0x20] sm:$0xff] %v2056
        %2171 = vst [vmem:[%s244 + $0x28] sm:$0xff] %v2059
        %2172 = vst [vmem:[%s244 + $0x30] sm:$0xff] %v2064
        %2173 = vst [vmem:[%s244 + $0x38] sm:$0xff] %v2067
        %2174 = vst [vmem:[%s244 + $0x40] sm:$0xff] %v2072
        %2175 = vst [vmem:[%s244 + $0x48] sm:$0xff] %v2075
        %2176 = vst [vmem:[%s244 + $0x50] sm:$0xff] %v2080
        %2177 = vst [vmem:[%s244 + $0x58] sm:$0xff] %v2083
        %2178 = vst [vmem:[%s244 + $0x60] sm:$0xff] %v2088
        %2179 = vst [vmem:[%s244 + $0x68] sm:$0xff] %v2091
        %2180 = vst [vmem:[%s244 + $0x70] sm:$0xff] %v2096
        %2181 = vst [vmem:[%s244 + $0x78] sm:$0xff] %v2099
        %2182 = vst [vmem:[%s244 + $0x80] sm:$0xff] %v2104
        %2183 = vst [vmem:[%s244 + $0x88] sm:$0xff] %v2107
        %2184 = vst [vmem:[%s244 + $0x90] sm:$0xff] %v2112
        %2185 = vst [vmem:[%s244 + $0x98] sm:$0xff] %v2115
        %2186 = vst [vmem:[%s244 + $0xa0] sm:$0xff] %v2120
        %2187 = vst [vmem:[%s244 + $0xa8] sm:$0xff] %v2123
        %2188 = vst [vmem:[%s244 + $0xb0] sm:$0xff] %v2128
        %2189 = vst [vmem:[%s244 + $0xb8] sm:$0xff] %v2131
        %2190 = vst [vmem:[%s244 + $0xc0] sm:$0xff] %v2136
        %2191 = vst [vmem:[%s244 + $0xc8] sm:$0xff] %v2139
        %2192 = vst [vmem:[%s244 + $0xd0] sm:$0xff] %v2144
        %2193 = vst [vmem:[%s244 + $0xd8] sm:$0xff] %v2147
        %2194 = vst [vmem:[%s244 + $0xe0] sm:$0xff] %v2152
        %2195 = vst [vmem:[%s244 + $0xe8] sm:$0xff] %v2155
        %2196 = vst [vmem:[%s244 + $0xf0] sm:$0xff] %v2160
        %2197 = vst [vmem:[%s244 + $0xf8] sm:$0xff] %v2163
        %s2198 = sand.u32 %s119, 1
        %s2199 = scalar_lea.sflag [#allocation4], %s2198
        %s2200 = sand.u32 %s119, 1
        %s2201 = smul.addr %s2200, 256
        %s2202 = scalar_lea.vmem [#allocation8], %s2201
        // Predicated region
        $region49: #{tpu_custom_call.1} parent=35 // pred_check
          %p2203 = pneg %p129
        $region50: #{tpu_custom_call.1} parent=35 // pred_check_branch
          %2205 = sbr.rel (%p2203) target = $region52
        $region51: #{tpu_custom_call.1} parent=35 // pred_region
          %s2206 = smul.u32 32, %s22
          %s2208 = ssub.s32 4096, 4096
          %2209 = vsyncadd %s2199, %s2208
          %s2210 = smul.addr %s2206, 128
          %s2211 = scalar_lea.hbm %s4, %s2210
          %s2212 = sshll.u32 %s2202, 4
          %s2213 = int_to_ptr.vmem [resolvable:$true] %s2212
          %2218 = dma.vmem_to_hbm [thread:$0]  %s2213, 4096, %s2211, %s2199, 128, 128, 8
        $region52: #{tpu_custom_call.1} parent=35 // pred_fallthru
          _
      $region36: #{tpu_custom_call.1} parent=5 // pred_fallthru
        _
      %p2219 = scmp.le.s32.totalorder 2, %s17
      // Predicated region
      $region53: #{tpu_custom_call.1} parent=5 // pred_check
        %p2220 = pneg %p2219
      $region54: #{tpu_custom_call.1} parent=5 // pred_check_branch
        %2222 = sbr.rel (%p2220) target = $region56
      $region55: #{tpu_custom_call.1} parent=5 // pred_region
        %s2223 = ssub.s32 %s17, 2
        // Predicated region
        $region57: #{tpu_custom_call.1} parent=55 // pred_check
          %p2224 = pneg %p135
        $region58: #{tpu_custom_call.1} parent=55 // pred_check_branch
          %2226 = sbr.rel (%p2224) target = $region60
        $region59: #{tpu_custom_call.1} parent=55 // pred_region
          %s2227 = sand.u32 %s120, 1
          %s2228 = scalar_lea.sflag [#allocation4], %s2227
          %s2229 = sand.u32 %s120, 1
          %s2230 = smul.addr %s2229, 256
          %s2231 = scalar_lea.vmem [#allocation8], %s2230
          %2232 = dma.done %s2228, 4096
        $region60: #{tpu_custom_call.1} parent=55 // pred_fallthru
          _
      $region56: #{tpu_custom_call.1} parent=5 // pred_fallthru
        _
    $region6: #{tpu_custom_call.1} parent=1 // loop_footer
      %s21 = sadd.s32 1, %s17
    $region7: #{tpu_custom_call.1} parent=1 // loop_footer_branch
      %16 = sbr.rel target = $region3
    $region8: #{tpu_custom_call.1} parent=1 // loop_exit
      _
    %2233 = vsyncpa [#allocation3], 1
    %s2234 = scalar_lea.sflag [#allocation3], 1
    %2235 = vsyncpa %s2234, 1
    %2236 = vsyncpa [#allocation6], 1
    %s2237 = scalar_lea.sflag [#allocation6], 1
    %2238 = vsyncpa %s2237, 1
    %2239 = vsyncpa [#allocation4], 1
    %s2240 = scalar_lea.sflag [#allocation4], 1
    %2241 = vsyncpa %s2240, 1

</llo_original>
